<compile_context>
chip_gen: v7x
topology: tpu7x:2x2x1
jax: 0.10.0
libtpu: 0.0.40
codegen_flags: <defaults>
</compile_context>

<pallas_src>
import functools

import jax
import jax.numpy as jnp
from jax.experimental import pallas as pl
from jax.experimental.pallas import tpu as pltpu

LANE = 128


# ----------------------------------------------------------------------------
# tiling helpers
# ----------------------------------------------------------------------------
def _round_up(x, m):
    return ((x + m - 1) // m) * m


def _pick_batch_tile(b_total):
    """Sublane-aligned batch tile; prefer >=2 batch tiles (v7x megacore)."""
    if b_total % 8 != 0:
        return b_total                      # tiny/odd batch: one full tile
    for tb in (32, 24, 16, 8):
        if tb < b_total and b_total % tb == 0:
            return tb                       # >=2 tiles, tb kept modest
    return 8


def _pick_hw_tile(hw, tb, target=1024, row_cap=8192):
    """Spatial tile: multiple of 8, large enough to amortize the ~0.35us
    grid-step overhead, capped so tb*tm rows of f32/bf16 intermediates stay
    well inside a 48 MiB VMEM budget (safe on v7x 64 MiB, easy on v5e/v6e)."""
    tm = min(target, max(8, row_cap // max(tb, 1)))
    tm = max(8, (tm // 8) * 8)
    return min(tm, _round_up(hw, 8))


# ----------------------------------------------------------------------------
# fused backbone kernel
# ----------------------------------------------------------------------------
def _fused_backbone_kernel(x_ref, stem_w, stem_b, exp_w, exp_b,
                           proj_w, proj_b, head_w, head_b,
                           pool_ref, *, hw_total, need_mask):
    """Fused stem + expand + project(+residual) + head + global-avg-pool.

    x_ref    : (TB, TM, Kp) bf16 im2col patch tile
    *_w      : bf16 padded weights (whole array, VMEM resident)
    stem_b/exp_b/head_b : (1, Cp) bf16 biases; proj_b : (1, Cp) f32 bias
    pool_ref : (TB, CFp) f32 pooled embeddings (accumulated over hw axis)
    """
    j = pl.program_id(1)

    @pl.when(j == 0)
    def _init():
        pool_ref[...] = jnp.zeros_like(pool_ref)

    tb, tm, kp = x_ref.shape
    x = x_ref[...].reshape(tb * tm, kp)

    def silu(v):                             # bf16 epilogue (v6e/v7x bf16 VPU/EUP)
        return v * jax.nn.sigmoid(v)

    # Stem conv 3x3/s2 as im2col matmul: f32 MXU acc, bf16 bias+SiLU epilogue.
    h = jnp.dot(x, stem_w[...], preferred_element_type=jnp.float32)
    h = silu(h.astype(jnp.bfloat16) + stem_b[...])

    # MBConv-style 1x1 expand.
    e = jnp.dot(h, exp_w[...], preferred_element_type=jnp.float32)
    e = silu(e.astype(jnp.bfloat16) + exp_b[...])

    # 1x1 project + residual (residual add kept in f32).
    p = jnp.dot(e, proj_w[...], preferred_element_type=jnp.float32) + proj_b[...]
    r = (h.astype(jnp.float32) + p).astype(jnp.bfloat16)

    # 1x1 feature head.
    f = jnp.dot(r, head_w[...], preferred_element_type=jnp.float32)
    f = silu(f.astype(jnp.bfloat16) + head_b[...])

    # Fused global-average-pool: accumulate per-batch row sums directly into
    # the VMEM-resident output block (same output block index for every j).
    f = f.reshape(tb, tm, -1)
    if need_mask:                            # zero padded tail rows of last tile
        row = jax.lax.broadcasted_iota(jnp.int32, (1, tm, 1), 1) + j * tm
        f = jnp.where(row < hw_total, f, jnp.zeros_like(f))
    pool_ref[...] += jnp.sum(f, axis=1, dtype=jnp.float32)

    @pl.when(j == pl.num_programs(1) - 1)
    def _finalize():
        pool_ref[...] = pool_ref[...] * (1.0 / hw_total)


def fused_backbone(patches, packed, *, hw_total, feat_cp):
    """patches: (2B, HW, Kp) bf16 -> pooled embeddings (2B, CFp) f32."""
    b_total, hw, kp = patches.shape
    tb = _pick_batch_tile(b_total)
    tm = _pick_hw_tile(hw, tb)
    hw_pad = _round_up(hw, tm)
    if hw_pad != hw:                         # robust to awkward H*W
        patches = jnp.pad(patches, ((0, 0), (0, hw_pad - hw), (0, 0)))
    grid = (b_total // tb, hw_pad // tm)

    def full(arr):
        return pl.BlockSpec(arr.shape, lambda b, j: (0,) * arr.ndim)

    return pl.pallas_call(
        functools.partial(_fused_backbone_kernel,
                          hw_total=hw_total, need_mask=(hw_pad != hw)),
        out_shape=jax.ShapeDtypeStruct((b_total, feat_cp), jnp.float32),
        grid=grid,
        in_specs=[
            pl.BlockSpec((tb, tm, kp), lambda b, j: (b, j, 0)),
            full(packed["stem_w"]), full(packed["stem_b"]),
            full(packed["exp_w"]),  full(packed["exp_b"]),
            full(packed["proj_w"]), full(packed["proj_b"]),
            full(packed["head_w"]), full(packed["head_b"]),
        ],
        out_specs=pl.BlockSpec((tb, feat_cp), lambda b, j: (b, 0)),
        compiler_params=pltpu.CompilerParams(
            dimension_semantics=("parallel", "arbitrary"),
            vmem_limit_bytes=48 * 1024 * 1024),
    )(patches, packed["stem_w"], packed["stem_b"],
      packed["exp_w"], packed["exp_b"],
      packed["proj_w"], packed["proj_b"],
      packed["head_w"], packed["head_b"])


# ----------------------------------------------------------------------------
# JAX glue: patch extraction, parameters, forward
# ----------------------------------------------------------------------------
def extract_patches_3x3_s2(x_nhwc):
    """(B, H, W, C) -> (B, Ho*Wo, 9*C) f32 patches (single XLA patch-conv)."""
    b, h, w, c = x_nhwc.shape
    p = jax.lax.conv_general_dilated_patches(
        x_nhwc, filter_shape=(3, 3), window_strides=(2, 2),
        padding=((1, 1), (1, 1)),
        dimension_numbers=("NHWC", "HWIO", "NHWC"))
    ho, wo = p.shape[1], p.shape[2]
    return p.reshape(b, ho * wo, 9 * c), ho, wo


def init_params(key, cin=3, stem_c=16, exp_c=32, feat_c=64):
    ks = jax.random.split(key, 8)

    def norm(k, shape, scale=0.1):
        return jax.random.normal(k, shape, jnp.float32) * scale

    return {
        "stem_w": norm(ks[0], (9 * cin, stem_c)),
        "stem_b": norm(ks[1], (stem_c,), 0.01),
        "exp_w":  norm(ks[2], (stem_c, exp_c)),
        "exp_b":  norm(ks[3], (exp_c,), 0.01),
        "proj_w": norm(ks[4], (exp_c, stem_c)),
        "proj_b": norm(ks[5], (stem_c,), 0.01),
        "head_w": norm(ks[6], (stem_c, feat_c)),
        "head_b": norm(ks[7], (feat_c,), 0.01),
    }


def pack_params(params):
    """Zero-pad to lane-friendly sizes (done ONCE, outside the jitted path).
    bf16 weights; bf16 biases for the SiLU layers, f32 bias for the residual."""
    k_in, stem_c = params["stem_w"].shape
    exp_c = params["exp_w"].shape[1]
    feat_c = params["head_w"].shape[1]
    kp = _round_up(k_in, 32)
    c1 = _round_up(stem_c, LANE)
    c2 = _round_up(exp_c, LANE)
    cf = _round_up(feat_c, LANE)

    def pad_w(w, rows, cols):
        return jnp.pad(w, ((0, rows - w.shape[0]),
                           (0, cols - w.shape[1]))).astype(jnp.bfloat16)

    def pad_b(b, cols, dtype):
        return jnp.pad(b, (0, cols - b.shape[0])).reshape(1, cols).astype(dtype)

    return {
        "stem_w": pad_w(params["stem_w"], kp, c1),
        "stem_b": pad_b(params["stem_b"], c1, jnp.bfloat16),
        "exp_w":  pad_w(params["exp_w"], c1, c2),
        "exp_b":  pad_b(params["exp_b"], c2, jnp.bfloat16),
        "proj_w": pad_w(params["proj_w"], c2, c1),
        "proj_b": pad_b(params["proj_b"], c1, jnp.float32),
        "head_w": pad_w(params["head_w"], c1, cf),
        "head_b": pad_b(params["head_b"], cf, jnp.bfloat16),
    }


def siamese_forward(image_1, image_2, packed, feat_c):
    """Equivalent of SiameseEff.forward -> (output1, output2, distance)."""
    batch = image_1.shape[0]
    kp = packed["stem_w"].shape[0]
    feat_cp = packed["head_w"].shape[1]

    # Both Siamese branches share weights: batch them through one backbone pass.
    x = jnp.concatenate([image_1, image_2], axis=0)            # (2B, C, H, W)
    x = jnp.transpose(x, (0, 2, 3, 1)).astype(jnp.float32)     # NHWC
    patches, ho, wo = extract_patches_3x3_s2(x)
    patches = jnp.pad(patches, ((0, 0), (0, 0), (0, kp - patches.shape[-1])))
    patches = patches.astype(jnp.bfloat16)

    pooled = fused_backbone(patches, packed, hw_total=ho * wo, feat_cp=feat_cp)

    # Tiny Siamese head in plain jnp (XLA fuses it) -- no dedicated kernel.
    out1 = pooled[:batch, :feat_c]
    out2 = pooled[batch:, :feat_c]
    dist = jnp.sqrt(jnp.sum((out1 - out2) ** 2, axis=1))
    return out1, out2, dist


def reference_forward(image_1, image_2, params):
    """Pure f32 jnp reference with identical forward semantics."""
    def silu(v):
        return v * jax.nn.sigmoid(v)

    def backbone(img):
        x = jnp.transpose(img, (0, 2, 3, 1)).astype(jnp.float32)
        patches, _, _ = extract_patches_3x3_s2(x)
        h = silu(patches @ params["stem_w"] + params["stem_b"])
        e = silu(h @ params["exp_w"] + params["exp_b"])
        r = h + (e @ params["proj_w"] + params["proj_b"])
        f = silu(r @ params["head_w"] + params["head_b"])
        return jnp.mean(f, axis=1)

    o1 = backbone(image_1)
    o2 = backbone(image_2)
    return o1, o2, jnp.sqrt(jnp.sum((o1 - o2) ** 2, axis=1))


# ----------------------------------------------------------------------------
if __name__ == "__main__":
    key = jax.random.PRNGKey(0)
    k1, k2, kparams = jax.random.split(key, 3)

    # Small, EfficientNet-consistent inputs: NCHW, 3-channel RGB.
    image_1 = jax.random.normal(k1, (2, 3, 16, 16), jnp.float32)
    image_2 = jax.random.normal(k2, (2, 3, 16, 16), jnp.float32)

    params = init_params(kparams)
    packed = pack_params(params)          # pack/pad/bf16-cast weights once

    fwd = jax.jit(lambda a, b: siamese_forward(a, b, packed, feat_c=64))
    out1, out2, dist = fwd(image_1, image_2)
    jax.block_until_ready((out1, out2, dist))

    assert out1.shape == (2, 64) and out2.shape == (2, 64) and dist.shape == (2,)

    # distance must be the euclidean distance of the returned embeddings
    d_check = jnp.sqrt(jnp.sum((out1 - out2) ** 2, axis=1))
    assert jnp.allclose(dist, d_check, rtol=1e-5, atol=1e-6)

    # end-to-end parity vs. pure-f32 reference (loose tolerance: bf16 kernel)
    r1, r2, rd = reference_forward(image_1, image_2, params)
    assert jnp.max(jnp.abs(out1 - r1)) < 5e-2
    assert jnp.max(jnp.abs(out2 - r2)) < 5e-2
    assert jnp.max(jnp.abs(dist - rd)) < 1e-1

    print("KERNEL_OK")
</pallas_src>

<mosaic_0001>
module attributes {stable_mosaic.version = 11 : i64} {
  func.func @_fused_backbone_kernel(%arg0: i32, %arg1: i32, %arg2: memref<4x64x32xbf16, #tpu.memory_space<vmem>>, %arg3: memref<32x128xbf16, #tpu.memory_space<vmem>>, %arg4: memref<1x128xbf16, #tpu.memory_space<vmem>>, %arg5: memref<128x128xbf16, #tpu.memory_space<vmem>>, %arg6: memref<1x128xbf16, #tpu.memory_space<vmem>>, %arg7: memref<128x128xbf16, #tpu.memory_space<vmem>>, %arg8: memref<1x128xf32, #tpu.memory_space<vmem>>, %arg9: memref<128x128xbf16, #tpu.memory_space<vmem>>, %arg10: memref<1x128xbf16, #tpu.memory_space<vmem>>, %arg11: memref<4x128xf32, #tpu.memory_space<vmem>>) attributes {dimension_semantics = [#tpu.dimension_semantics<parallel>, #tpu.dimension_semantics<arbitrary>], iteration_bounds = array<i64: 1, 1>, scalar_prefetch = 0 : i64, scratch_operands = 0 : i64, tpu.core_type = #tpu.core_type<tc>, window_params = [{transform_indices = @transform_0, window_bounds = array<i64: 4, 64, 32>}, {pipeline_mode = #tpu.pipeline_mode<synchronous>, transform_indices = @transform_1, window_bounds = array<i64: 32, 128>}, {pipeline_mode = #tpu.pipeline_mode<synchronous>, transform_indices = @transform_2, window_bounds = array<i64: 1, 128>}, {pipeline_mode = #tpu.pipeline_mode<synchronous>, transform_indices = @transform_3, window_bounds = array<i64: 128, 128>}, {pipeline_mode = #tpu.pipeline_mode<synchronous>, transform_indices = @transform_4, window_bounds = array<i64: 1, 128>}, {pipeline_mode = #tpu.pipeline_mode<synchronous>, transform_indices = @transform_5, window_bounds = array<i64: 128, 128>}, {pipeline_mode = #tpu.pipeline_mode<synchronous>, transform_indices = @transform_6, window_bounds = array<i64: 1, 128>}, {pipeline_mode = #tpu.pipeline_mode<synchronous>, transform_indices = @transform_7, window_bounds = array<i64: 128, 128>}, {pipeline_mode = #tpu.pipeline_mode<synchronous>, transform_indices = @transform_8, window_bounds = array<i64: 1, 128>}, {transform_indices = @transform_9, window_bounds = array<i64: 4, 128>}]} {
    %c0_i32 = arith.constant 0 : i32
    %0 = arith.cmpi eq, %arg1, %c0_i32 : i32
    %1 = arith.extui %0 : i1 to i32
    %c0_i32_0 = arith.constant 0 : i32
    %2 = arith.cmpi ne, %1, %c0_i32_0 : i32
    scf.if %2 {
      %cst_32 = arith.constant 0.000000e+00 : f32
      %58 = vector.broadcast %cst_32 : f32 to vector<4x128xf32>
      %c0_33 = arith.constant 0 : index
      %c0_34 = arith.constant 0 : index
      %59 = vector.load %arg11[%c0_33, %c0_34] : memref<4x128xf32, #tpu.memory_space<vmem>>, vector<4x128xf32>
      tpu.vector_store %arg11[%c0_33, %c0_34], %58 {strides = array<i32>} : memref<4x128xf32, #tpu.memory_space<vmem>>, vector<4x128xf32>,
    } else {
    }
    %c0 = arith.constant 0 : index
    %c0_1 = arith.constant 0 : index
    %c0_2 = arith.constant 0 : index
    %3 = vector.load %arg2[%c0, %c0_1, %c0_2] : memref<4x64x32xbf16, #tpu.memory_space<vmem>>, vector<4x64x32xbf16>
    %4 = vector.shape_cast %3 : vector<4x64x32xbf16> to vector<256x32xbf16>
    %c0_3 = arith.constant 0 : index
    %c0_4 = arith.constant 0 : index
    %5 = vector.load %arg3[%c0_3, %c0_4] : memref<32x128xbf16, #tpu.memory_space<vmem>>, vector<32x128xbf16>
    %cst = arith.constant dense<0.000000e+00> : vector<256x128xf32>
    %6 = tpu.matmul %4, %5, %cst {dimension_numbers = #tpu.dot_dimension_numbers<[1], [0], [0], [1], [0, 0, 1, 1], [], []>} : vector<256x32xbf16>, vector<32x128xbf16>, vector<256x128xf32> -> vector<256x128xf32>
    %7 = arith.truncf %6 : vector<256x128xf32> to vector<256x128xbf16>
    %c0_5 = arith.constant 0 : index
    %c0_6 = arith.constant 0 : index
    %8 = vector.load %arg4[%c0_5, %c0_6] : memref<1x128xbf16, #tpu.memory_space<vmem>>, vector<1x128xbf16>
    %9 = vector.broadcast %8 : vector<1x128xbf16> to vector<256x128xbf16>
    %10 = arith.addf %7, %9 : vector<256x128xbf16>
    %11 = arith.negf %10 : vector<256x128xbf16>
    %12 = math.exp %11 : vector<256x128xbf16>
    %cst_7 = arith.constant 1.000000e+00 : bf16
    %13 = vector.broadcast %cst_7 : bf16 to vector<256x128xbf16>
    %14 = arith.addf %13, %12 : vector<256x128xbf16>
    %15 = arith.divf %13, %14 : vector<256x128xbf16>
    %16 = arith.mulf %10, %15 : vector<256x128xbf16>
    %c0_8 = arith.constant 0 : index
    %c0_9 = arith.constant 0 : index
    %17 = vector.load %arg5[%c0_8, %c0_9] : memref<128x128xbf16, #tpu.memory_space<vmem>>, vector<128x128xbf16>
    %cst_10 = arith.constant dense<0.000000e+00> : vector<256x128xf32>
    %18 = tpu.matmul %16, %17, %cst_10 {dimension_numbers = #tpu.dot_dimension_numbers<[1], [0], [0], [1], [0, 0, 1, 1], [], []>} : vector<256x128xbf16>, vector<128x128xbf16>, vector<256x128xf32> -> vector<256x128xf32>
    %19 = arith.truncf %18 : vector<256x128xf32> to vector<256x128xbf16>
    %c0_11 = arith.constant 0 : index
    %c0_12 = arith.constant 0 : index
    %20 = vector.load %arg6[%c0_11, %c0_12] : memref<1x128xbf16, #tpu.memory_space<vmem>>, vector<1x128xbf16>
    %21 = vector.broadcast %20 : vector<1x128xbf16> to vector<256x128xbf16>
    %22 = arith.addf %19, %21 : vector<256x128xbf16>
    %23 = arith.negf %22 : vector<256x128xbf16>
    %24 = math.exp %23 : vector<256x128xbf16>
    %cst_13 = arith.constant 1.000000e+00 : bf16
    %25 = vector.broadcast %cst_13 : bf16 to vector<256x128xbf16>
    %26 = arith.addf %25, %24 : vector<256x128xbf16>
    %27 = arith.divf %25, %26 : vector<256x128xbf16>
    %28 = arith.mulf %22, %27 : vector<256x128xbf16>
    %c0_14 = arith.constant 0 : index
    %c0_15 = arith.constant 0 : index
    %29 = vector.load %arg7[%c0_14, %c0_15] : memref<128x128xbf16, #tpu.memory_space<vmem>>, vector<128x128xbf16>
    %cst_16 = arith.constant dense<0.000000e+00> : vector<256x128xf32>
    %30 = tpu.matmul %28, %29, %cst_16 {dimension_numbers = #tpu.dot_dimension_numbers<[1], [0], [0], [1], [0, 0, 1, 1], [], []>} : vector<256x128xbf16>, vector<128x128xbf16>, vector<256x128xf32> -> vector<256x128xf32>
    %c0_17 = arith.constant 0 : index
    %c0_18 = arith.constant 0 : index
    %31 = vector.load %arg8[%c0_17, %c0_18] : memref<1x128xf32, #tpu.memory_space<vmem>>, vector<1x128xf32>
    %32 = vector.broadcast %31 : vector<1x128xf32> to vector<256x128xf32>
    %33 = arith.addf %30, %32 : vector<256x128xf32>
    %34 = arith.extf %16 : vector<256x128xbf16> to vector<256x128xf32>
    %35 = arith.addf %34, %33 : vector<256x128xf32>
    %36 = arith.truncf %35 : vector<256x128xf32> to vector<256x128xbf16>
    %c0_19 = arith.constant 0 : index
    %c0_20 = arith.constant 0 : index
    %37 = vector.load %arg9[%c0_19, %c0_20] : memref<128x128xbf16, #tpu.memory_space<vmem>>, vector<128x128xbf16>
    %cst_21 = arith.constant dense<0.000000e+00> : vector<256x128xf32>
    %38 = tpu.matmul %36, %37, %cst_21 {dimension_numbers = #tpu.dot_dimension_numbers<[1], [0], [0], [1], [0, 0, 1, 1], [], []>} : vector<256x128xbf16>, vector<128x128xbf16>, vector<256x128xf32> -> vector<256x128xf32>
    %39 = arith.truncf %38 : vector<256x128xf32> to vector<256x128xbf16>
    %c0_22 = arith.constant 0 : index
    %c0_23 = arith.constant 0 : index
    %40 = vector.load %arg10[%c0_22, %c0_23] : memref<1x128xbf16, #tpu.memory_space<vmem>>, vector<1x128xbf16>
    %41 = vector.broadcast %40 : vector<1x128xbf16> to vector<256x128xbf16>
    %42 = arith.addf %39, %41 : vector<256x128xbf16>
    %43 = arith.negf %42 : vector<256x128xbf16>
    %44 = math.exp %43 : vector<256x128xbf16>
    %cst_24 = arith.constant 1.000000e+00 : bf16
    %45 = vector.broadcast %cst_24 : bf16 to vector<256x128xbf16>
    %46 = arith.addf %45, %44 : vector<256x128xbf16>
    %47 = arith.divf %45, %46 : vector<256x128xbf16>
    %48 = arith.mulf %42, %47 : vector<256x128xbf16>
    %49 = vector.shape_cast %48 : vector<256x128xbf16> to vector<4x64x128xbf16>
    %c0_25 = arith.constant 0 : index
    %c0_26 = arith.constant 0 : index
    %50 = vector.load %arg11[%c0_25, %c0_26] : memref<4x128xf32, #tpu.memory_space<vmem>>, vector<4x128xf32>
    %51 = arith.extf %49 : vector<4x64x128xbf16> to vector<4x64x128xf32>
    %cst_27 = arith.constant dense<0.000000e+00> : vector<4x128xf32>
    %52 = vector.multi_reduction <add>, %51, %cst_27 [1] : vector<4x64x128xf32> to vector<4x128xf32>
    %53 = arith.addf %50, %52 : vector<4x128xf32>
    %c0_28 = arith.constant 0 : index
    %c0_29 = arith.constant 0 : index
    %54 = vector.load %arg11[%c0_28, %c0_29] : memref<4x128xf32, #tpu.memory_space<vmem>>, vector<4x128xf32>
    tpu.vector_store %arg11[%c0_28, %c0_29], %53 {strides = array<i32>} : memref<4x128xf32, #tpu.memory_space<vmem>>, vector<4x128xf32>,
    %c0_i32_30 = arith.constant 0 : i32
    %55 = arith.cmpi eq, %arg1, %c0_i32_30 : i32
    %56 = arith.extui %55 : i1 to i32
    %c0_i32_31 = arith.constant 0 : i32
    %57 = arith.cmpi ne, %56, %c0_i32_31 : i32
    scf.if %57 {
      %c0_32 = arith.constant 0 : index
      %c0_33 = arith.constant 0 : index
      %58 = vector.load %arg11[%c0_32, %c0_33] : memref<4x128xf32, #tpu.memory_space<vmem>>, vector<4x128xf32>
      %cst_34 = arith.constant 1.562500e-02 : f32
      %59 = vector.broadcast %cst_34 : f32 to vector<4x128xf32>
      %60 = arith.mulf %58, %59 : vector<4x128xf32>
      %c0_35 = arith.constant 0 : index
      %c0_36 = arith.constant 0 : index
      %61 = vector.load %arg11[%c0_35, %c0_36] : memref<4x128xf32, #tpu.memory_space<vmem>>, vector<4x128xf32>
      tpu.vector_store %arg11[%c0_35, %c0_36], %60 {strides = array<i32>} : memref<4x128xf32, #tpu.memory_space<vmem>>, vector<4x128xf32>,
    } else {
    }
    return
  }
  func.func @transform_0(%arg0: i32, %arg1: i32) -> (i32, i32, i32) {
    %c0_i32 = arith.constant 0 : i32
    %c0_i32_0 = arith.constant 0 : i32
    return %arg0, %arg1, %c0_i32 : i32, i32, i32
  }
  func.func @transform_1(%arg0: i32, %arg1: i32) -> (i32, i32) {
    %c0_i32 = arith.constant 0 : i32
    %c0_i32_0 = arith.constant 0 : i32
    %c0_i32_1 = arith.constant 0 : i32
    return %c0_i32, %c0_i32_0 : i32, i32
  }
  func.func @transform_2(%arg0: i32, %arg1: i32) -> (i32, i32) {
    %c0_i32 = arith.constant 0 : i32
    %c0_i32_0 = arith.constant 0 : i32
    %c0_i32_1 = arith.constant 0 : i32
    return %c0_i32, %c0_i32_0 : i32, i32
  }
  func.func @transform_3(%arg0: i32, %arg1: i32) -> (i32, i32) {
    %c0_i32 = arith.constant 0 : i32
    %c0_i32_0 = arith.constant 0 : i32
    %c0_i32_1 = arith.constant 0 : i32
    return %c0_i32, %c0_i32_0 : i32, i32
  }
  func.func @transform_4(%arg0: i32, %arg1: i32) -> (i32, i32) {
    %c0_i32 = arith.constant 0 : i32
    %c0_i32_0 = arith.constant 0 : i32
    %c0_i32_1 = arith.constant 0 : i32
    return %c0_i32, %c0_i32_0 : i32, i32
  }
  func.func @transform_5(%arg0: i32, %arg1: i32) -> (i32, i32) {
    %c0_i32 = arith.constant 0 : i32
    %c0_i32_0 = arith.constant 0 : i32
    %c0_i32_1 = arith.constant 0 : i32
    return %c0_i32, %c0_i32_0 : i32, i32
  }
  func.func @transform_6(%arg0: i32, %arg1: i32) -> (i32, i32) {
    %c0_i32 = arith.constant 0 : i32
    %c0_i32_0 = arith.constant 0 : i32
    %c0_i32_1 = arith.constant 0 : i32
    return %c0_i32, %c0_i32_0 : i32, i32
  }
  func.func @transform_7(%arg0: i32, %arg1: i32) -> (i32, i32) {
    %c0_i32 = arith.constant 0 : i32
    %c0_i32_0 = arith.constant 0 : i32
    %c0_i32_1 = arith.constant 0 : i32
    return %c0_i32, %c0_i32_0 : i32, i32
  }
  func.func @transform_8(%arg0: i32, %arg1: i32) -> (i32, i32) {
    %c0_i32 = arith.constant 0 : i32
    %c0_i32_0 = arith.constant 0 : i32
    %c0_i32_1 = arith.constant 0 : i32
    return %c0_i32, %c0_i32_0 : i32, i32
  }
  func.func @transform_9(%arg0: i32, %arg1: i32) -> (i32, i32) {
    %c0_i32 = arith.constant 0 : i32
    %c0_i32_0 = arith.constant 0 : i32
    return %arg0, %c0_i32 : i32, i32
  }
}

</mosaic_0001>

<llo_original>
// kernel: _lambda_.1
$region0: #{_lambda_.1}
  #allocation0 [shape = 'u32[]', space=smem, size = 0x4, offset = 0x4, fixed_abs, tag = 'smem constant byte address 0x4 - core index']
  #allocation1 [shape = 'u32[144,128]{1,0:T(1,128)}', space=vmem, size = 0x12000, scoped, tag = 'internal scratch']
  %s0 = inlined_call_operand.vmem [shape: bf16[4,64,32], index: 0, kind: input, shape index: {}]
  %s1 = inlined_call_operand.vmem [shape: bf16[32,128], index: 1, kind: input, shape index: {}]
  %s2 = inlined_call_operand.vmem [shape: bf16[1,128], index: 2, kind: input, shape index: {}]
  %s3 = inlined_call_operand.vmem [shape: bf16[128,128], index: 3, kind: input, shape index: {}]
  %s4 = inlined_call_operand.vmem [shape: bf16[1,128], index: 4, kind: input, shape index: {}]
  %s5 = inlined_call_operand.vmem [shape: bf16[128,128], index: 5, kind: input, shape index: {}]
  %s6 = inlined_call_operand.vmem [shape: f32[1,128], index: 6, kind: input, shape index: {}]
  %s7 = inlined_call_operand.vmem [shape: bf16[128,128], index: 7, kind: input, shape index: {}]
  %s8 = inlined_call_operand.vmem [shape: bf16[1,128], index: 8, kind: input, shape index: {}]
  %s9 = inlined_call_operand.vmem [shape: f32[4,128], index: 9, kind: output, shape index: {}]
  %s10 = sld [smem:[#allocation0]]
  $region54: #{_lambda_.1} parent=0
    _
  %s12 = ssub.s32 1, %s10
  %s13 = scalar_select 0, %s12, %s10
  // Predicated region
  $region2: #{_lambda_.1} parent=0 // pred_check
    _
  $region3: #{_lambda_.1} parent=0 // pred_check_branch
    %15 = sbr.rel (0) target = $region5
  $region4: #{_lambda_.1} parent=0 // pred_region
    _
  $region5: #{_lambda_.1} parent=0 // pred_fallthru
    _
  // Predicated region
  $region6: #{_lambda_.1} parent=0 // pred_check
    _
  $region7: #{_lambda_.1} parent=0 // pred_check_branch
    %17 = sbr.rel (0) target = $region9
  $region8: #{_lambda_.1} parent=0 // pred_region
    _
  $region9: #{_lambda_.1} parent=0 // pred_fallthru
    _
  // Predicated region
  $region10: #{_lambda_.1} parent=0 // pred_check
    _
  $region11: #{_lambda_.1} parent=0 // pred_check_branch
    %19 = sbr.rel (0) target = $region13
  $region12: #{_lambda_.1} parent=0 // pred_region
    _
  $region13: #{_lambda_.1} parent=0 // pred_fallthru
    _
  // Predicated region
  $region14: #{_lambda_.1} parent=0 // pred_check
    _
  $region15: #{_lambda_.1} parent=0 // pred_check_branch
    %21 = sbr.rel (0) target = $region17
  $region16: #{_lambda_.1} parent=0 // pred_region
    _
  $region17: #{_lambda_.1} parent=0 // pred_fallthru
    _
  // Predicated region
  $region18: #{_lambda_.1} parent=0 // pred_check
    _
  $region19: #{_lambda_.1} parent=0 // pred_check_branch
    %23 = sbr.rel (0) target = $region21
  $region20: #{_lambda_.1} parent=0 // pred_region
    _
  $region21: #{_lambda_.1} parent=0 // pred_fallthru
    _
  // Predicated region
  $region22: #{_lambda_.1} parent=0 // pred_check
    _
  $region23: #{_lambda_.1} parent=0 // pred_check_branch
    %25 = sbr.rel (0) target = $region25
  $region24: #{_lambda_.1} parent=0 // pred_region
    _
  $region25: #{_lambda_.1} parent=0 // pred_fallthru
    _
  // Predicated region
  $region26: #{_lambda_.1} parent=0 // pred_check
    _
  $region27: #{_lambda_.1} parent=0 // pred_check_branch
    %27 = sbr.rel (0) target = $region29
  $region28: #{_lambda_.1} parent=0 // pred_region
    _
  $region29: #{_lambda_.1} parent=0 // pred_fallthru
    _
  // Predicated region
  $region30: #{_lambda_.1} parent=0 // pred_check
    _
  $region31: #{_lambda_.1} parent=0 // pred_check_branch
    %29 = sbr.rel (0) target = $region33
  $region32: #{_lambda_.1} parent=0 // pred_region
    _
  $region33: #{_lambda_.1} parent=0 // pred_fallthru
    _
  // Predicated region
  $region34: #{_lambda_.1} parent=0 // pred_check
    _
  $region35: #{_lambda_.1} parent=0 // pred_check_branch
    %31 = sbr.rel (0) target = $region37
  $region36: #{_lambda_.1} parent=0 // pred_region
    _
  $region37: #{_lambda_.1} parent=0 // pred_fallthru
    _
  %p34 = scmp.eq.s32.totalorder 0, 0
  // Predicated region
  $region38: #{_lambda_.1} parent=0 // pred_check
    %p35 = pneg %p34
  $region39: #{_lambda_.1} parent=0 // pred_check_branch
    %37 = sbr.rel (%p35) target = $region41
  $region40: #{_lambda_.1} parent=0 // pred_region
    %38 = vst [vmem:[%s9] sm:$0xf] 0.0
  $region41: #{_lambda_.1} parent=0 // pred_fallthru
    _
  %v39 = vld [vmem:[%s0] sm:$0xf]
  %v40 = vld [vmem:[%s0 + $0x4] sm:$0xf]
  %v41 = vld [vmem:[%s0 + $0x8] sm:$0xf]
  %v42 = vld [vmem:[%s0 + $0xc] sm:$0xf]
  %v43 = vld [vmem:[%s0 + $0x10] sm:$0xf]
  %v44 = vld [vmem:[%s0 + $0x14] sm:$0xf]
  %v45 = vld [vmem:[%s0 + $0x18] sm:$0xf]
  %v46 = vld [vmem:[%s0 + $0x1c] sm:$0xf]
  %v47 = vld [vmem:[%s0 + $0x20] sm:$0xf]
  %v48 = vld [vmem:[%s0 + $0x24] sm:$0xf]
  %v49 = vld [vmem:[%s0 + $0x28] sm:$0xf]
  %v50 = vld [vmem:[%s0 + $0x2c] sm:$0xf]
  %v51 = vld [vmem:[%s0 + $0x30] sm:$0xf]
  %v52 = vld [vmem:[%s0 + $0x34] sm:$0xf]
  %v53 = vld [vmem:[%s0 + $0x38] sm:$0xf]
  %v54 = vld [vmem:[%s0 + $0x3c] sm:$0xf]
  %v55 = vld [vmem:[%s0 + $0x40] sm:$0xf]
  %v56 = vld [vmem:[%s0 + $0x44] sm:$0xf]
  %v57 = vld [vmem:[%s0 + $0x48] sm:$0xf]
  %v58 = vld [vmem:[%s0 + $0x4c] sm:$0xf]
  %v59 = vld [vmem:[%s0 + $0x50] sm:$0xf]
  %v60 = vld [vmem:[%s0 + $0x54] sm:$0xf]
  %v61 = vld [vmem:[%s0 + $0x58] sm:$0xf]
  %v62 = vld [vmem:[%s0 + $0x5c] sm:$0xf]
  %v63 = vld [vmem:[%s0 + $0x60] sm:$0xf]
  %v64 = vld [vmem:[%s0 + $0x64] sm:$0xf]
  %v65 = vld [vmem:[%s0 + $0x68] sm:$0xf]
  %v66 = vld [vmem:[%s0 + $0x6c] sm:$0xf]
  %v67 = vld [vmem:[%s0 + $0x70] sm:$0xf]
  %v68 = vld [vmem:[%s0 + $0x74] sm:$0xf]
  %v69 = vld [vmem:[%s0 + $0x78] sm:$0xf]
  %v70 = vld [vmem:[%s0 + $0x7c] sm:$0xf]
  %v71 = vld [vmem:[%s1] sm:$0xf]
  %v72 = vld [vmem:[%s1 + $0x4] sm:$0xf]
  %v73 = vld [vmem:[%s1 + $0x8] sm:$0xf]
  %v74 = vld [vmem:[%s1 + $0xc] sm:$0xf]
  %v107 = vunpack.c.l.b16 %v39
  %v108 = vunpack.c.l.b16 %v40
  %v109 = vunpack.c.l.b16 %v41
  %v110 = vunpack.c.l.b16 %v42
  %v111 = vunpack.c.l.b16 %v43
  %v112 = vunpack.c.l.b16 %v44
  %v113 = vunpack.c.l.b16 %v45
  %v114 = vunpack.c.l.b16 %v46
  %v115 = vunpack.c.l.b16 %v47
  %v116 = vunpack.c.l.b16 %v48
  %v117 = vunpack.c.l.b16 %v49
  %v118 = vunpack.c.l.b16 %v50
  %v119 = vunpack.c.l.b16 %v51
  %v120 = vunpack.c.l.b16 %v52
  %v121 = vunpack.c.l.b16 %v53
  %v122 = vunpack.c.l.b16 %v54
  %v123 = vunpack.c.l.b16 %v55
  %v124 = vunpack.c.l.b16 %v56
  %v125 = vunpack.c.l.b16 %v57
  %v126 = vunpack.c.l.b16 %v58
  %v127 = vunpack.c.l.b16 %v59
  %v128 = vunpack.c.l.b16 %v60
  %v129 = vunpack.c.l.b16 %v61
  %v130 = vunpack.c.l.b16 %v62
  %v131 = vunpack.c.l.b16 %v63
  %v132 = vunpack.c.l.b16 %v64
  %v133 = vunpack.c.l.b16 %v65
  %v134 = vunpack.c.l.b16 %v66
  %v135 = vunpack.c.l.b16 %v67
  %v136 = vunpack.c.l.b16 %v68
  %v137 = vunpack.c.l.b16 %v69
  %v138 = vunpack.c.l.b16 %v70
  %v139 = vpack.c.b16 %v108, %v107
  %v140 = vpack.c.b16 %v110, %v109
  %v141 = vpack.c.b16 %v112, %v111
  %v142 = vpack.c.b16 %v114, %v113
  %v143 = vpack.c.b16 %v116, %v115
  %v144 = vpack.c.b16 %v118, %v117
  %v145 = vpack.c.b16 %v120, %v119
  %v146 = vpack.c.b16 %v122, %v121
  %v147 = vpack.c.b16 %v124, %v123
  %v148 = vpack.c.b16 %v126, %v125
  %v149 = vpack.c.b16 %v128, %v127
  %v150 = vpack.c.b16 %v130, %v129
  %v151 = vpack.c.b16 %v132, %v131
  %v152 = vpack.c.b16 %v134, %v133
  %v153 = vpack.c.b16 %v136, %v135
  %v154 = vpack.c.b16 %v138, %v137
  %v159 = vunpack.c.l.b16 %v71
  %v160 = vunpack.c.l.b16 %v72
  %v161 = vunpack.c.l.b16 %v73
  %v162 = vunpack.c.l.b16 %v74
  %v163 = vpack.c.b16 %v160, %v159
  %v164 = vpack.c.b16 %v162, %v161
  %vm167 = vcmask 261120
  %v169 = vsel %vm167, %v139, 0
  %v172 = vsel %vm167, %v140, 0
  %v175 = vsel %vm167, %v141, 0
  %v178 = vsel %vm167, %v142, 0
  %v181 = vsel %vm167, %v143, 0
  %v184 = vsel %vm167, %v144, 0
  %v187 = vsel %vm167, %v145, 0
  %v190 = vsel %vm167, %v146, 0
  %v193 = vsel %vm167, %v147, 0
  %v196 = vsel %vm167, %v148, 0
  %v199 = vsel %vm167, %v149, 0
  %v202 = vsel %vm167, %v150, 0
  %v205 = vsel %vm167, %v151, 0
  %v208 = vsel %vm167, %v152, 0
  %v211 = vsel %vm167, %v153, 0
  %v214 = vsel %vm167, %v154, 0
  %216 = vmatprep.subr.bf16.mxu0 0
  %217 = vmatpush1.bf16.msra.mxu0 %v163
  %218 = vmatprep.subr.bf16.mxu0 0
  %219 = vmatpush1.bf16.msra.mxu0 %v164
  %220 = vmatprep.subr.bf16.mxu0 0
  %221 = vmatpush1.bf16.msra.mxu0 0
  %222 = vmatprep.subr.bf16.mxu0 0
  %223 = vmatpush1.bf16.msra.mxu0 0
  %224 = vmatprep.subr.bf16.mxu0 0
  %225 = vmatpush1.bf16.msra.mxu0 0
  %226 = vmatprep.subr.bf16.mxu0 0
  %227 = vmatpush1.bf16.msra.mxu0 0
  %228 = vmatprep.subr.bf16.mxu0 0
  %229 = vmatpush1.bf16.msra.mxu0 0
  %230 = vmatprep.subr.bf16.mxu0 0
  %231 = vmatpush1.bf16.msra.mxu0 0
  %232 = vmatprep.subr.bf16.mxu0 0
  %233 = vmatpush1.bf16.msra.mxu0 0
  %234 = vmatprep.subr.bf16.mxu0 0
  %235 = vmatpush1.bf16.msra.mxu0 0
  %236 = vmatprep.subr.bf16.mxu0 0
  %237 = vmatpush1.bf16.msra.mxu0 0
  %238 = vmatprep.subr.bf16.mxu0 0
  %239 = vmatpush1.bf16.msra.mxu0 0
  %240 = vmatprep.subr.bf16.mxu0 0
  %241 = vmatpush1.bf16.msra.mxu0 0
  %242 = vmatprep.subr.bf16.mxu0 0
  %243 = vmatpush1.bf16.msra.mxu0 0
  %244 = vmatprep.subr.bf16.mxu0 0
  %245 = vmatpush1.bf16.msra.mxu0 0
  %246 = vmatprep.subr.bf16.mxu0 0
  %247 = vmatpush1.bf16.msra.mxu0 0
  %248 = vmatprep.mubr.bf16.mxu0 0
  %249 = vmatmul.mubr.bf16.gmra.mrb[0].mxu0 %v169
  %v250 = vpop.f32.mrb[0].mxu0
  %v251 = vadd.f32 0.0, %v250
  %v252 = vpop.f32.mrb[0].mxu0
  %v253 = vpop.f32.mrb[0].mxu0
  %v254 = vadd.f32 0.0, %v253
  %v255 = vpop.f32.mrb[0].mxu0
  %256 = vmatprep.mubr.bf16.mxu0 0
  %257 = vmatmul.mubr.bf16.gmra.mrb[0].mxu0 %v172
  %v258 = vpop.f32.mrb[0].mxu0
  %v259 = vadd.f32 0.0, %v258
  %v260 = vpop.f32.mrb[0].mxu0
  %v261 = vpop.f32.mrb[0].mxu0
  %v262 = vadd.f32 0.0, %v261
  %v263 = vpop.f32.mrb[0].mxu0
  %264 = vmatprep.mubr.bf16.mxu0 0
  %265 = vmatmul.mubr.bf16.gmra.mrb[0].mxu0 %v175
  %v266 = vpop.f32.mrb[0].mxu0
  %v267 = vadd.f32 0.0, %v266
  %v268 = vpop.f32.mrb[0].mxu0
  %v269 = vpop.f32.mrb[0].mxu0
  %v270 = vadd.f32 0.0, %v269
  %v271 = vpop.f32.mrb[0].mxu0
  %272 = vmatprep.mubr.bf16.mxu0 0
  %273 = vmatmul.mubr.bf16.gmra.mrb[0].mxu0 %v178
  %v274 = vpop.f32.mrb[0].mxu0
  %v275 = vadd.f32 0.0, %v274
  %v276 = vpop.f32.mrb[0].mxu0
  %v277 = vpop.f32.mrb[0].mxu0
  %v278 = vadd.f32 0.0, %v277
  %v279 = vpop.f32.mrb[0].mxu0
  %280 = vmatprep.mubr.bf16.mxu0 0
  %281 = vmatmul.mubr.bf16.gmra.mrb[0].mxu0 %v181
  %v282 = vpop.f32.mrb[0].mxu0
  %v283 = vadd.f32 0.0, %v282
  %v284 = vpop.f32.mrb[0].mxu0
  %v285 = vpop.f32.mrb[0].mxu0
  %v286 = vadd.f32 0.0, %v285
  %v287 = vpop.f32.mrb[0].mxu0
  %288 = vmatprep.mubr.bf16.mxu0 0
  %289 = vmatmul.mubr.bf16.gmra.mrb[0].mxu0 %v184
  %v290 = vpop.f32.mrb[0].mxu0
  %v291 = vadd.f32 0.0, %v290
  %v292 = vpop.f32.mrb[0].mxu0
  %v293 = vpop.f32.mrb[0].mxu0
  %v294 = vadd.f32 0.0, %v293
  %v295 = vpop.f32.mrb[0].mxu0
  %296 = vmatprep.mubr.bf16.mxu0 0
  %297 = vmatmul.mubr.bf16.gmra.mrb[0].mxu0 %v187
  %v298 = vpop.f32.mrb[0].mxu0
  %v299 = vadd.f32 0.0, %v298
  %v300 = vpop.f32.mrb[0].mxu0
  %v301 = vpop.f32.mrb[0].mxu0
  %v302 = vadd.f32 0.0, %v301
  %v303 = vpop.f32.mrb[0].mxu0
  %304 = vmatprep.mubr.bf16.mxu0 0
  %305 = vmatmul.mubr.bf16.gmra.mrb[0].mxu0 %v190
  %v306 = vpop.f32.mrb[0].mxu0
  %v307 = vadd.f32 0.0, %v306
  %v308 = vpop.f32.mrb[0].mxu0
  %v309 = vpop.f32.mrb[0].mxu0
  %v310 = vadd.f32 0.0, %v309
  %v311 = vpop.f32.mrb[0].mxu0
  %312 = vmatprep.mubr.bf16.mxu0 0
  %313 = vmatmul.mubr.bf16.gmra.mrb[0].mxu0 %v193
  %v314 = vpop.f32.mrb[0].mxu0
  %v315 = vadd.f32 0.0, %v314
  %v316 = vpop.f32.mrb[0].mxu0
  %v317 = vpop.f32.mrb[0].mxu0
  %v318 = vadd.f32 0.0, %v317
  %v319 = vpop.f32.mrb[0].mxu0
  %320 = vmatprep.mubr.bf16.mxu0 0
  %321 = vmatmul.mubr.bf16.gmra.mrb[0].mxu0 %v196
  %v322 = vpop.f32.mrb[0].mxu0
  %v323 = vadd.f32 0.0, %v322
  %v324 = vpop.f32.mrb[0].mxu0
  %v325 = vpop.f32.mrb[0].mxu0
  %v326 = vadd.f32 0.0, %v325
  %v327 = vpop.f32.mrb[0].mxu0
  %328 = vmatprep.mubr.bf16.mxu0 0
  %329 = vmatmul.mubr.bf16.gmra.mrb[0].mxu0 %v199
  %v330 = vpop.f32.mrb[0].mxu0
  %v331 = vadd.f32 0.0, %v330
  %v332 = vpop.f32.mrb[0].mxu0
  %v333 = vpop.f32.mrb[0].mxu0
  %v334 = vadd.f32 0.0, %v333
  %v335 = vpop.f32.mrb[0].mxu0
  %336 = vmatprep.mubr.bf16.mxu0 0
  %337 = vmatmul.mubr.bf16.gmra.mrb[0].mxu0 %v202
  %v338 = vpop.f32.mrb[0].mxu0
  %v339 = vadd.f32 0.0, %v338
  %v340 = vpop.f32.mrb[0].mxu0
  %v341 = vpop.f32.mrb[0].mxu0
  %v342 = vadd.f32 0.0, %v341
  %v343 = vpop.f32.mrb[0].mxu0
  %344 = vmatprep.mubr.bf16.mxu0 0
  %345 = vmatmul.mubr.bf16.gmra.mrb[0].mxu0 %v205
  %v346 = vpop.f32.mrb[0].mxu0
  %v347 = vadd.f32 0.0, %v346
  %v348 = vpop.f32.mrb[0].mxu0
  %v349 = vpop.f32.mrb[0].mxu0
  %v350 = vadd.f32 0.0, %v349
  %v351 = vpop.f32.mrb[0].mxu0
  %352 = vmatprep.mubr.bf16.mxu0 0
  %353 = vmatmul.mubr.bf16.gmra.mrb[0].mxu0 %v208
  %v354 = vpop.f32.mrb[0].mxu0
  %v355 = vadd.f32 0.0, %v354
  %v356 = vpop.f32.mrb[0].mxu0
  %v357 = vpop.f32.mrb[0].mxu0
  %v358 = vadd.f32 0.0, %v357
  %v359 = vpop.f32.mrb[0].mxu0
  %360 = vmatprep.mubr.bf16.mxu0 0
  %361 = vmatmul.mubr.bf16.gmra.mrb[0].mxu0 %v211
  %v362 = vpop.f32.mrb[0].mxu0
  %v363 = vadd.f32 0.0, %v362
  %v364 = vpop.f32.mrb[0].mxu0
  %v365 = vpop.f32.mrb[0].mxu0
  %v366 = vadd.f32 0.0, %v365
  %v367 = vpop.f32.mrb[0].mxu0
  %368 = vmatprep.mubr.bf16.mxu0 0
  %369 = vmatmul.mubr.bf16.gmra.mrb[0].mxu0 %v214
  %v370 = vpop.f32.mrb[0].mxu0
  %v371 = vadd.f32 0.0, %v370
  %v372 = vpop.f32.mrb[0].mxu0
  %v373 = vpop.f32.mrb[0].mxu0
  %v374 = vadd.f32 0.0, %v373
  %v375 = vpop.f32.mrb[0].mxu0
  %376 = vdwg.mxu0
  %v377 = vpack.c.bf16 %v254, %v251
  %v378 = vpack.c.bf16 %v262, %v259
  %v379 = vpack.c.bf16 %v270, %v267
  %v380 = vpack.c.bf16 %v278, %v275
  %v381 = vpack.c.bf16 %v286, %v283
  %v382 = vpack.c.bf16 %v294, %v291
  %v383 = vpack.c.bf16 %v302, %v299
  %v384 = vpack.c.bf16 %v310, %v307
  %v385 = vpack.c.bf16 %v318, %v315
  %v386 = vpack.c.bf16 %v326, %v323
  %v387 = vpack.c.bf16 %v334, %v331
  %v388 = vpack.c.bf16 %v342, %v339
  %v389 = vpack.c.bf16 %v350, %v347
  %v390 = vpack.c.bf16 %v358, %v355
  %v391 = vpack.c.bf16 %v366, %v363
  %v392 = vpack.c.bf16 %v374, %v371
  %v393 = vld [vmem:[%s2] sm:$0x1]
  %v395 = vpack.i.b16 %v393, %v393
  %v397 = vlaneseq
  %v398 = vshrl.u32 %v397, 7
  %v399 = vsub.s32 0, %v398
  %v400 = vrot.slane %v395, %v399
  %v401 = vadd.bf16 %v377, %v400
  %v402 = vadd.bf16 %v378, %v400
  %v403 = vadd.bf16 %v379, %v400
  %v404 = vadd.bf16 %v380, %v400
  %v405 = vadd.bf16 %v381, %v400
  %v406 = vadd.bf16 %v382, %v400
  %v407 = vadd.bf16 %v383, %v400
  %v408 = vadd.bf16 %v384, %v400
  %v409 = vadd.bf16 %v385, %v400
  %v410 = vadd.bf16 %v386, %v400
  %v411 = vadd.bf16 %v387, %v400
  %v412 = vadd.bf16 %v388, %v400
  %v413 = vadd.bf16 %v389, %v400
  %v414 = vadd.bf16 %v390, %v400
  %v415 = vadd.bf16 %v391, %v400
  %v416 = vadd.bf16 %v392, %v400
  %v417 = vxor.u32 %v401, 2147516416
  %v418 = vxor.u32 %v402, 2147516416
  %v419 = vxor.u32 %v403, 2147516416
  %v420 = vxor.u32 %v404, 2147516416
  %v421 = vxor.u32 %v405, 2147516416
  %v422 = vxor.u32 %v406, 2147516416
  %v423 = vxor.u32 %v407, 2147516416
  %v424 = vxor.u32 %v408, 2147516416
  %v425 = vxor.u32 %v409, 2147516416
  %v426 = vxor.u32 %v410, 2147516416
  %v427 = vxor.u32 %v411, 2147516416
  %v428 = vxor.u32 %v412, 2147516416
  %v429 = vxor.u32 %v413, 2147516416
  %v430 = vxor.u32 %v414, 2147516416
  %v431 = vxor.u32 %v415, 2147516416
  %v432 = vxor.u32 %v416, 2147516416
  %v434 = vmul.bf16 %v417, 1069105081
  %v435 = vpow.bf16.pop %v434
  %v437 = vmul.bf16 %v418, 1069105081
  %v438 = vpow.bf16.pop %v437
  %v440 = vmul.bf16 %v419, 1069105081
  %v441 = vpow.bf16.pop %v440
  %v443 = vmul.bf16 %v420, 1069105081
  %v444 = vpow.bf16.pop %v443
  %v446 = vmul.bf16 %v421, 1069105081
  %v447 = vpow.bf16.pop %v446
  %v449 = vmul.bf16 %v422, 1069105081
  %v450 = vpow.bf16.pop %v449
  %v452 = vmul.bf16 %v423, 1069105081
  %v453 = vpow.bf16.pop %v452
  %v455 = vmul.bf16 %v424, 1069105081
  %v456 = vpow.bf16.pop %v455
  %v458 = vmul.bf16 %v425, 1069105081
  %v459 = vpow.bf16.pop %v458
  %v461 = vmul.bf16 %v426, 1069105081
  %v462 = vpow.bf16.pop %v461
  %v464 = vmul.bf16 %v427, 1069105081
  %v465 = vpow.bf16.pop %v464
  %v467 = vmul.bf16 %v428, 1069105081
  %v468 = vpow.bf16.pop %v467
  %v470 = vmul.bf16 %v429, 1069105081
  %v471 = vpow.bf16.pop %v470
  %v473 = vmul.bf16 %v430, 1069105081
  %v474 = vpow.bf16.pop %v473
  %v476 = vmul.bf16 %v431, 1069105081
  %v477 = vpow.bf16.pop %v476
  %v479 = vmul.bf16 %v432, 1069105081
  %v480 = vpow.bf16.pop %v479
  %v481 = vadd.bf16 %v435, 1065369472
  %v482 = vadd.bf16 %v438, 1065369472
  %v483 = vadd.bf16 %v441, 1065369472
  %v484 = vadd.bf16 %v444, 1065369472
  %v485 = vadd.bf16 %v447, 1065369472
  %v486 = vadd.bf16 %v450, 1065369472
  %v487 = vadd.bf16 %v453, 1065369472
  %v488 = vadd.bf16 %v456, 1065369472
  %v489 = vadd.bf16 %v459, 1065369472
  %v490 = vadd.bf16 %v462, 1065369472
  %v491 = vadd.bf16 %v465, 1065369472
  %v492 = vadd.bf16 %v468, 1065369472
  %v493 = vadd.bf16 %v471, 1065369472
  %v494 = vadd.bf16 %v474, 1065369472
  %v495 = vadd.bf16 %v477, 1065369472
  %v496 = vadd.bf16 %v480, 1065369472
  %v497 = vrcp.bf16.pop %v481
  %v498 = vmul.bf16 1065369472, %v497
  %v499 = vrcp.bf16.pop %v482
  %v500 = vmul.bf16 1065369472, %v499
  %v501 = vrcp.bf16.pop %v483
  %v502 = vmul.bf16 1065369472, %v501
  %v503 = vrcp.bf16.pop %v484
  %v504 = vmul.bf16 1065369472, %v503
  %v505 = vrcp.bf16.pop %v485
  %v506 = vmul.bf16 1065369472, %v505
  %v507 = vrcp.bf16.pop %v486
  %v508 = vmul.bf16 1065369472, %v507
  %v509 = vrcp.bf16.pop %v487
  %v510 = vmul.bf16 1065369472, %v509
  %v511 = vrcp.bf16.pop %v488
  %v512 = vmul.bf16 1065369472, %v511
  %v513 = vrcp.bf16.pop %v489
  %v514 = vmul.bf16 1065369472, %v513
  %v515 = vrcp.bf16.pop %v490
  %v516 = vmul.bf16 1065369472, %v515
  %v517 = vrcp.bf16.pop %v491
  %v518 = vmul.bf16 1065369472, %v517
  %v519 = vrcp.bf16.pop %v492
  %v520 = vmul.bf16 1065369472, %v519
  %v521 = vrcp.bf16.pop %v493
  %v522 = vmul.bf16 1065369472, %v521
  %v523 = vrcp.bf16.pop %v494
  %v524 = vmul.bf16 1065369472, %v523
  %v525 = vrcp.bf16.pop %v495
  %v526 = vmul.bf16 1065369472, %v525
  %v527 = vrcp.bf16.pop %v496
  %v528 = vmul.bf16 1065369472, %v527
  %v529 = vmul.bf16 %v401, %v498
  %v530 = vmul.bf16 %v402, %v500
  %v531 = vmul.bf16 %v403, %v502
  %v532 = vmul.bf16 %v404, %v504
  %v533 = vmul.bf16 %v405, %v506
  %v534 = vmul.bf16 %v406, %v508
  %v535 = vmul.bf16 %v407, %v510
  %v536 = vmul.bf16 %v408, %v512
  %v537 = vmul.bf16 %v409, %v514
  %v538 = vmul.bf16 %v410, %v516
  %v539 = vmul.bf16 %v411, %v518
  %v540 = vmul.bf16 %v412, %v520
  %v541 = vmul.bf16 %v413, %v522
  %v542 = vmul.bf16 %v414, %v524
  %v543 = vmul.bf16 %v415, %v526
  %v544 = vmul.bf16 %v416, %v528
  %v545 = vld [vmem:[%s3] sm:$0xf]
  %v546 = vld [vmem:[%s3 + $0x4] sm:$0xf]
  %v547 = vld [vmem:[%s3 + $0x8] sm:$0xf]
  %v548 = vld [vmem:[%s3 + $0xc] sm:$0xf]
  %v549 = vld [vmem:[%s3 + $0x10] sm:$0xf]
  %v550 = vld [vmem:[%s3 + $0x14] sm:$0xf]
  %v551 = vld [vmem:[%s3 + $0x18] sm:$0xf]
  %v552 = vld [vmem:[%s3 + $0x1c] sm:$0xf]
  %v553 = vld [vmem:[%s3 + $0x20] sm:$0xf]
  %v554 = vld [vmem:[%s3 + $0x24] sm:$0xf]
  %v555 = vld [vmem:[%s3 + $0x28] sm:$0xf]
  %v556 = vld [vmem:[%s3 + $0x2c] sm:$0xf]
  %v557 = vld [vmem:[%s3 + $0x30] sm:$0xf]
  %v558 = vld [vmem:[%s3 + $0x34] sm:$0xf]
  %v559 = vld [vmem:[%s3 + $0x38] sm:$0xf]
  %v560 = vld [vmem:[%s3 + $0x3c] sm:$0xf]
  %v577 = vunpack.c.l.b16 %v545
  %v578 = vunpack.c.l.b16 %v546
  %v579 = vunpack.c.l.b16 %v547
  %v580 = vunpack.c.l.b16 %v548
  %v581 = vunpack.c.l.b16 %v549
  %v582 = vunpack.c.l.b16 %v550
  %v583 = vunpack.c.l.b16 %v551
  %v584 = vunpack.c.l.b16 %v552
  %v585 = vunpack.c.l.b16 %v553
  %v586 = vunpack.c.l.b16 %v554
  %v587 = vunpack.c.l.b16 %v555
  %v588 = vunpack.c.l.b16 %v556
  %v589 = vunpack.c.l.b16 %v557
  %v590 = vunpack.c.l.b16 %v558
  %v591 = vunpack.c.l.b16 %v559
  %v592 = vunpack.c.l.b16 %v560
  %v593 = vpack.c.b16 %v578, %v577
  %v594 = vpack.c.b16 %v580, %v579
  %v595 = vpack.c.b16 %v582, %v581
  %v596 = vpack.c.b16 %v584, %v583
  %v597 = vpack.c.b16 %v586, %v585
  %v598 = vpack.c.b16 %v588, %v587
  %v599 = vpack.c.b16 %v590, %v589
  %v600 = vpack.c.b16 %v592, %v591
  %609 = vmatprep.subr.bf16.mxu0 0
  %610 = vmatpush1.bf16.msra.mxu0 %v593
  %611 = vmatprep.subr.bf16.mxu0 0
  %612 = vmatpush1.bf16.msra.mxu0 %v594
  %613 = vmatprep.subr.bf16.mxu0 0
  %614 = vmatpush1.bf16.msra.mxu0 %v595
  %615 = vmatprep.subr.bf16.mxu0 0
  %616 = vmatpush1.bf16.msra.mxu0 %v596
  %617 = vmatprep.subr.bf16.mxu0 0
  %618 = vmatpush1.bf16.msra.mxu0 %v597
  %619 = vmatprep.subr.bf16.mxu0 0
  %620 = vmatpush1.bf16.msra.mxu0 %v598
  %621 = vmatprep.subr.bf16.mxu0 0
  %622 = vmatpush1.bf16.msra.mxu0 %v599
  %623 = vmatprep.subr.bf16.mxu0 0
  %624 = vmatpush1.bf16.msra.mxu0 %v600
  %625 = vmatprep.subr.bf16.mxu0 0
  %626 = vmatpush1.bf16.msra.mxu0 0
  %627 = vmatprep.subr.bf16.mxu0 0
  %628 = vmatpush1.bf16.msra.mxu0 0
  %629 = vmatprep.subr.bf16.mxu0 0
  %630 = vmatpush1.bf16.msra.mxu0 0
  %631 = vmatprep.subr.bf16.mxu0 0
  %632 = vmatpush1.bf16.msra.mxu0 0
  %633 = vmatprep.subr.bf16.mxu0 0
  %634 = vmatpush1.bf16.msra.mxu0 0
  %635 = vmatprep.subr.bf16.mxu0 0
  %636 = vmatpush1.bf16.msra.mxu0 0
  %637 = vmatprep.subr.bf16.mxu0 0
  %638 = vmatpush1.bf16.msra.mxu0 0
  %639 = vmatprep.subr.bf16.mxu0 0
  %640 = vmatpush1.bf16.msra.mxu0 0
  %641 = vmatprep.mubr.bf16.mxu0 0
  %642 = vmatmul.mubr.bf16.gmra.mrb[0].mxu0 %v529
  %v643 = vpop.f32.mrb[0].mxu0
  %v644 = vadd.f32 0.0, %v643
  %v645 = vpop.f32.mrb[0].mxu0
  %v646 = vpop.f32.mrb[0].mxu0
  %v647 = vadd.f32 0.0, %v646
  %v648 = vpop.f32.mrb[0].mxu0
  %649 = vmatprep.mubr.bf16.mxu0 0
  %650 = vmatmul.mubr.bf16.gmra.mrb[0].mxu0 %v530
  %v651 = vpop.f32.mrb[0].mxu0
  %v652 = vadd.f32 0.0, %v651
  %v653 = vpop.f32.mrb[0].mxu0
  %v654 = vpop.f32.mrb[0].mxu0
  %v655 = vadd.f32 0.0, %v654
  %v656 = vpop.f32.mrb[0].mxu0
  %657 = vmatprep.mubr.bf16.mxu0 0
  %658 = vmatmul.mubr.bf16.gmra.mrb[0].mxu0 %v531
  %v659 = vpop.f32.mrb[0].mxu0
  %v660 = vadd.f32 0.0, %v659
  %v661 = vpop.f32.mrb[0].mxu0
  %v662 = vpop.f32.mrb[0].mxu0
  %v663 = vadd.f32 0.0, %v662
  %v664 = vpop.f32.mrb[0].mxu0
  %665 = vmatprep.mubr.bf16.mxu0 0
  %666 = vmatmul.mubr.bf16.gmra.mrb[0].mxu0 %v532
  %v667 = vpop.f32.mrb[0].mxu0
  %v668 = vadd.f32 0.0, %v667
  %v669 = vpop.f32.mrb[0].mxu0
  %v670 = vpop.f32.mrb[0].mxu0
  %v671 = vadd.f32 0.0, %v670
  %v672 = vpop.f32.mrb[0].mxu0
  %673 = vmatprep.mubr.bf16.mxu0 0
  %674 = vmatmul.mubr.bf16.gmra.mrb[0].mxu0 %v533
  %v675 = vpop.f32.mrb[0].mxu0
  %v676 = vadd.f32 0.0, %v675
  %v677 = vpop.f32.mrb[0].mxu0
  %v678 = vpop.f32.mrb[0].mxu0
  %v679 = vadd.f32 0.0, %v678
  %v680 = vpop.f32.mrb[0].mxu0
  %681 = vmatprep.mubr.bf16.mxu0 0
  %682 = vmatmul.mubr.bf16.gmra.mrb[0].mxu0 %v534
  %v683 = vpop.f32.mrb[0].mxu0
  %v684 = vadd.f32 0.0, %v683
  %v685 = vpop.f32.mrb[0].mxu0
  %v686 = vpop.f32.mrb[0].mxu0
  %v687 = vadd.f32 0.0, %v686
  %v688 = vpop.f32.mrb[0].mxu0
  %689 = vmatprep.mubr.bf16.mxu0 0
  %690 = vmatmul.mubr.bf16.gmra.mrb[0].mxu0 %v535
  %v691 = vpop.f32.mrb[0].mxu0
  %v692 = vadd.f32 0.0, %v691
  %v693 = vpop.f32.mrb[0].mxu0
  %v694 = vpop.f32.mrb[0].mxu0
  %v695 = vadd.f32 0.0, %v694
  %v696 = vpop.f32.mrb[0].mxu0
  %697 = vmatprep.mubr.bf16.mxu0 0
  %698 = vmatmul.mubr.bf16.gmra.mrb[0].mxu0 %v536
  %v699 = vpop.f32.mrb[0].mxu0
  %v700 = vadd.f32 0.0, %v699
  %v701 = vpop.f32.mrb[0].mxu0
  %v702 = vpop.f32.mrb[0].mxu0
  %v703 = vadd.f32 0.0, %v702
  %v704 = vpop.f32.mrb[0].mxu0
  %705 = vmatprep.mubr.bf16.mxu0 0
  %706 = vmatmul.mubr.bf16.gmra.mrb[0].mxu0 %v537
  %v707 = vpop.f32.mrb[0].mxu0
  %v708 = vadd.f32 0.0, %v707
  %v709 = vpop.f32.mrb[0].mxu0
  %v710 = vpop.f32.mrb[0].mxu0
  %v711 = vadd.f32 0.0, %v710
  %v712 = vpop.f32.mrb[0].mxu0
  %713 = vmatprep.mubr.bf16.mxu0 0
  %714 = vmatmul.mubr.bf16.gmra.mrb[0].mxu0 %v538
  %v715 = vpop.f32.mrb[0].mxu0
  %v716 = vadd.f32 0.0, %v715
  %v717 = vpop.f32.mrb[0].mxu0
  %v718 = vpop.f32.mrb[0].mxu0
  %v719 = vadd.f32 0.0, %v718
  %v720 = vpop.f32.mrb[0].mxu0
  %721 = vmatprep.mubr.bf16.mxu0 0
  %722 = vmatmul.mubr.bf16.gmra.mrb[0].mxu0 %v539
  %v723 = vpop.f32.mrb[0].mxu0
  %v724 = vadd.f32 0.0, %v723
  %v725 = vpop.f32.mrb[0].mxu0
  %v726 = vpop.f32.mrb[0].mxu0
  %v727 = vadd.f32 0.0, %v726
  %v728 = vpop.f32.mrb[0].mxu0
  %729 = vmatprep.mubr.bf16.mxu0 0
  %730 = vmatmul.mubr.bf16.gmra.mrb[0].mxu0 %v540
  %v731 = vpop.f32.mrb[0].mxu0
  %v732 = vadd.f32 0.0, %v731
  %v733 = vpop.f32.mrb[0].mxu0
  %v734 = vpop.f32.mrb[0].mxu0
  %v735 = vadd.f32 0.0, %v734
  %v736 = vpop.f32.mrb[0].mxu0
  %737 = vmatprep.mubr.bf16.mxu0 0
  %738 = vmatmul.mubr.bf16.gmra.mrb[0].mxu0 %v541
  %v739 = vpop.f32.mrb[0].mxu0
  %v740 = vadd.f32 0.0, %v739
  %v741 = vpop.f32.mrb[0].mxu0
  %v742 = vpop.f32.mrb[0].mxu0
  %v743 = vadd.f32 0.0, %v742
  %v744 = vpop.f32.mrb[0].mxu0
  %745 = vmatprep.mubr.bf16.mxu0 0
  %746 = vmatmul.mubr.bf16.gmra.mrb[0].mxu0 %v542
  %v747 = vpop.f32.mrb[0].mxu0
  %v748 = vadd.f32 0.0, %v747
  %v749 = vpop.f32.mrb[0].mxu0
  %v750 = vpop.f32.mrb[0].mxu0
  %v751 = vadd.f32 0.0, %v750
  %v752 = vpop.f32.mrb[0].mxu0
  %753 = vmatprep.mubr.bf16.mxu0 0
  %754 = vmatmul.mubr.bf16.gmra.mrb[0].mxu0 %v543
  %v755 = vpop.f32.mrb[0].mxu0
  %v756 = vadd.f32 0.0, %v755
  %v757 = vpop.f32.mrb[0].mxu0
  %v758 = vpop.f32.mrb[0].mxu0
  %v759 = vadd.f32 0.0, %v758
  %v760 = vpop.f32.mrb[0].mxu0
  %761 = vmatprep.mubr.bf16.mxu0 0
  %762 = vmatmul.mubr.bf16.gmra.mrb[0].mxu0 %v544
  %v763 = vpop.f32.mrb[0].mxu0
  %v764 = vadd.f32 0.0, %v763
  %v765 = vpop.f32.mrb[0].mxu0
  %v766 = vpop.f32.mrb[0].mxu0
  %v767 = vadd.f32 0.0, %v766
  %v768 = vpop.f32.mrb[0].mxu0
  %769 = vdwg.mxu0
  %v770 = vpack.c.bf16 %v647, %v644
  %v771 = vpack.c.bf16 %v655, %v652
  %v772 = vpack.c.bf16 %v663, %v660
  %v773 = vpack.c.bf16 %v671, %v668
  %v774 = vpack.c.bf16 %v679, %v676
  %v775 = vpack.c.bf16 %v687, %v684
  %v776 = vpack.c.bf16 %v695, %v692
  %v777 = vpack.c.bf16 %v703, %v700
  %v778 = vpack.c.bf16 %v711, %v708
  %v779 = vpack.c.bf16 %v719, %v716
  %v780 = vpack.c.bf16 %v727, %v724
  %v781 = vpack.c.bf16 %v735, %v732
  %v782 = vpack.c.bf16 %v743, %v740
  %v783 = vpack.c.bf16 %v751, %v748
  %v784 = vpack.c.bf16 %v759, %v756
  %v785 = vpack.c.bf16 %v767, %v764
  %v786 = vld [vmem:[%s4] sm:$0x1]
  %v788 = vpack.i.b16 %v786, %v786
  %v790 = vlaneseq
  %v791 = vshrl.u32 %v790, 7
  %v792 = vsub.s32 0, %v791
  %v793 = vrot.slane %v788, %v792
  %v794 = vadd.bf16 %v770, %v793
  %v795 = vadd.bf16 %v771, %v793
  %v796 = vadd.bf16 %v772, %v793
  %v797 = vadd.bf16 %v773, %v793
  %v798 = vadd.bf16 %v774, %v793
  %v799 = vadd.bf16 %v775, %v793
  %v800 = vadd.bf16 %v776, %v793
  %v801 = vadd.bf16 %v777, %v793
  %v802 = vadd.bf16 %v778, %v793
  %v803 = vadd.bf16 %v779, %v793
  %v804 = vadd.bf16 %v780, %v793
  %v805 = vadd.bf16 %v781, %v793
  %v806 = vadd.bf16 %v782, %v793
  %v807 = vadd.bf16 %v783, %v793
  %v808 = vadd.bf16 %v784, %v793
  %v809 = vadd.bf16 %v785, %v793
  %v810 = vxor.u32 %v794, 2147516416
  %v811 = vxor.u32 %v795, 2147516416
  %v812 = vxor.u32 %v796, 2147516416
  %v813 = vxor.u32 %v797, 2147516416
  %v814 = vxor.u32 %v798, 2147516416
  %v815 = vxor.u32 %v799, 2147516416
  %v816 = vxor.u32 %v800, 2147516416
  %v817 = vxor.u32 %v801, 2147516416
  %v818 = vxor.u32 %v802, 2147516416
  %v819 = vxor.u32 %v803, 2147516416
  %v820 = vxor.u32 %v804, 2147516416
  %v821 = vxor.u32 %v805, 2147516416
  %v822 = vxor.u32 %v806, 2147516416
  %v823 = vxor.u32 %v807, 2147516416
  %v824 = vxor.u32 %v808, 2147516416
  %v825 = vxor.u32 %v809, 2147516416
  %v827 = vmul.bf16 %v810, 1069105081
  %v828 = vpow.bf16.pop %v827
  %v830 = vmul.bf16 %v811, 1069105081
  %v831 = vpow.bf16.pop %v830
  %v833 = vmul.bf16 %v812, 1069105081
  %v834 = vpow.bf16.pop %v833
  %v836 = vmul.bf16 %v813, 1069105081
  %v837 = vpow.bf16.pop %v836
  %v839 = vmul.bf16 %v814, 1069105081
  %v840 = vpow.bf16.pop %v839
  %v842 = vmul.bf16 %v815, 1069105081
  %v843 = vpow.bf16.pop %v842
  %v845 = vmul.bf16 %v816, 1069105081
  %v846 = vpow.bf16.pop %v845
  %v848 = vmul.bf16 %v817, 1069105081
  %v849 = vpow.bf16.pop %v848
  %v851 = vmul.bf16 %v818, 1069105081
  %v852 = vpow.bf16.pop %v851
  %v854 = vmul.bf16 %v819, 1069105081
  %v855 = vpow.bf16.pop %v854
  %v857 = vmul.bf16 %v820, 1069105081
  %v858 = vpow.bf16.pop %v857
  %v860 = vmul.bf16 %v821, 1069105081
  %v861 = vpow.bf16.pop %v860
  %v863 = vmul.bf16 %v822, 1069105081
  %v864 = vpow.bf16.pop %v863
  %v866 = vmul.bf16 %v823, 1069105081
  %v867 = vpow.bf16.pop %v866
  %v869 = vmul.bf16 %v824, 1069105081
  %v870 = vpow.bf16.pop %v869
  %v872 = vmul.bf16 %v825, 1069105081
  %v873 = vpow.bf16.pop %v872
  %v874 = vadd.bf16 %v828, 1065369472
  %v875 = vadd.bf16 %v831, 1065369472
  %v876 = vadd.bf16 %v834, 1065369472
  %v877 = vadd.bf16 %v837, 1065369472
  %v878 = vadd.bf16 %v840, 1065369472
  %v879 = vadd.bf16 %v843, 1065369472
  %v880 = vadd.bf16 %v846, 1065369472
  %v881 = vadd.bf16 %v849, 1065369472
  %v882 = vadd.bf16 %v852, 1065369472
  %v883 = vadd.bf16 %v855, 1065369472
  %v884 = vadd.bf16 %v858, 1065369472
  %v885 = vadd.bf16 %v861, 1065369472
  %v886 = vadd.bf16 %v864, 1065369472
  %v887 = vadd.bf16 %v867, 1065369472
  %v888 = vadd.bf16 %v870, 1065369472
  %v889 = vadd.bf16 %v873, 1065369472
  %v890 = vrcp.bf16.pop %v874
  %v891 = vmul.bf16 1065369472, %v890
  %v892 = vrcp.bf16.pop %v875
  %v893 = vmul.bf16 1065369472, %v892
  %v894 = vrcp.bf16.pop %v876
  %v895 = vmul.bf16 1065369472, %v894
  %v896 = vrcp.bf16.pop %v877
  %v897 = vmul.bf16 1065369472, %v896
  %v898 = vrcp.bf16.pop %v878
  %v899 = vmul.bf16 1065369472, %v898
  %v900 = vrcp.bf16.pop %v879
  %v901 = vmul.bf16 1065369472, %v900
  %v902 = vrcp.bf16.pop %v880
  %v903 = vmul.bf16 1065369472, %v902
  %v904 = vrcp.bf16.pop %v881
  %v905 = vmul.bf16 1065369472, %v904
  %v906 = vrcp.bf16.pop %v882
  %v907 = vmul.bf16 1065369472, %v906
  %v908 = vrcp.bf16.pop %v883
  %v909 = vmul.bf16 1065369472, %v908
  %v910 = vrcp.bf16.pop %v884
  %v911 = vmul.bf16 1065369472, %v910
  %v912 = vrcp.bf16.pop %v885
  %v913 = vmul.bf16 1065369472, %v912
  %v914 = vrcp.bf16.pop %v886
  %v915 = vmul.bf16 1065369472, %v914
  %v916 = vrcp.bf16.pop %v887
  %v917 = vmul.bf16 1065369472, %v916
  %v918 = vrcp.bf16.pop %v888
  %v919 = vmul.bf16 1065369472, %v918
  %v920 = vrcp.bf16.pop %v889
  %v921 = vmul.bf16 1065369472, %v920
  %v922 = vmul.bf16 %v794, %v891
  %v923 = vmul.bf16 %v795, %v893
  %v924 = vmul.bf16 %v796, %v895
  %v925 = vmul.bf16 %v797, %v897
  %v926 = vmul.bf16 %v798, %v899
  %v927 = vmul.bf16 %v799, %v901
  %v928 = vmul.bf16 %v800, %v903
  %v929 = vmul.bf16 %v801, %v905
  %v930 = vmul.bf16 %v802, %v907
  %v931 = vmul.bf16 %v803, %v909
  %v932 = vmul.bf16 %v804, %v911
  %v933 = vmul.bf16 %v805, %v913
  %v934 = vmul.bf16 %v806, %v915
  %v935 = vmul.bf16 %v807, %v917
  %v936 = vmul.bf16 %v808, %v919
  %v937 = vmul.bf16 %v809, %v921
  %v938 = vld [vmem:[%s5] sm:$0xf]
  %v939 = vld [vmem:[%s5 + $0x4] sm:$0xf]
  %v940 = vld [vmem:[%s5 + $0x8] sm:$0xf]
  %v941 = vld [vmem:[%s5 + $0xc] sm:$0xf]
  %v942 = vld [vmem:[%s5 + $0x10] sm:$0xf]
  %v943 = vld [vmem:[%s5 + $0x14] sm:$0xf]
  %v944 = vld [vmem:[%s5 + $0x18] sm:$0xf]
  %v945 = vld [vmem:[%s5 + $0x1c] sm:$0xf]
  %v946 = vld [vmem:[%s5 + $0x20] sm:$0xf]
  %v947 = vld [vmem:[%s5 + $0x24] sm:$0xf]
  %v948 = vld [vmem:[%s5 + $0x28] sm:$0xf]
  %v949 = vld [vmem:[%s5 + $0x2c] sm:$0xf]
  %v950 = vld [vmem:[%s5 + $0x30] sm:$0xf]
  %v951 = vld [vmem:[%s5 + $0x34] sm:$0xf]
  %v952 = vld [vmem:[%s5 + $0x38] sm:$0xf]
  %v953 = vld [vmem:[%s5 + $0x3c] sm:$0xf]
  %v954 = vld [vmem:[%s6] sm:$0x1]
  %v956 = vlaneseq
  %v957 = vshrl.u32 %v956, 7
  %v958 = vsub.s32 0, %v957
  %v959 = vrot.slane %v954, %v958
  %v977 = vunpack.c.l.b16 %v938
  %v978 = vunpack.c.l.b16 %v939
  %v979 = vunpack.c.l.b16 %v940
  %v980 = vunpack.c.l.b16 %v941
  %v981 = vunpack.c.l.b16 %v942
  %v982 = vunpack.c.l.b16 %v943
  %v983 = vunpack.c.l.b16 %v944
  %v984 = vunpack.c.l.b16 %v945
  %v985 = vunpack.c.l.b16 %v946
  %v986 = vunpack.c.l.b16 %v947
  %v987 = vunpack.c.l.b16 %v948
  %v988 = vunpack.c.l.b16 %v949
  %v989 = vunpack.c.l.b16 %v950
  %v990 = vunpack.c.l.b16 %v951
  %v991 = vunpack.c.l.b16 %v952
  %v992 = vunpack.c.l.b16 %v953
  %v993 = vpack.c.b16 %v978, %v977
  %v994 = vpack.c.b16 %v980, %v979
  %v995 = vpack.c.b16 %v982, %v981
  %v996 = vpack.c.b16 %v984, %v983
  %v997 = vpack.c.b16 %v986, %v985
  %v998 = vpack.c.b16 %v988, %v987
  %v999 = vpack.c.b16 %v990, %v989
  %v1000 = vpack.c.b16 %v992, %v991
  %1009 = vmatprep.subr.bf16.mxu0 0
  %1010 = vmatpush1.bf16.msra.mxu0 %v993
  %1011 = vmatprep.subr.bf16.mxu0 0
  %1012 = vmatpush1.bf16.msra.mxu0 %v994
  %1013 = vmatprep.subr.bf16.mxu0 0
  %1014 = vmatpush1.bf16.msra.mxu0 %v995
  %1015 = vmatprep.subr.bf16.mxu0 0
  %1016 = vmatpush1.bf16.msra.mxu0 %v996
  %1017 = vmatprep.subr.bf16.mxu0 0
  %1018 = vmatpush1.bf16.msra.mxu0 %v997
  %1019 = vmatprep.subr.bf16.mxu0 0
  %1020 = vmatpush1.bf16.msra.mxu0 %v998
  %1021 = vmatprep.subr.bf16.mxu0 0
  %1022 = vmatpush1.bf16.msra.mxu0 %v999
  %1023 = vmatprep.subr.bf16.mxu0 0
  %1024 = vmatpush1.bf16.msra.mxu0 %v1000
  %1025 = vmatprep.subr.bf16.mxu0 0
  %1026 = vmatpush1.bf16.msra.mxu0 0
  %1027 = vmatprep.subr.bf16.mxu0 0
  %1028 = vmatpush1.bf16.msra.mxu0 0
  %1029 = vmatprep.subr.bf16.mxu0 0
  %1030 = vmatpush1.bf16.msra.mxu0 0
  %1031 = vmatprep.subr.bf16.mxu0 0
  %1032 = vmatpush1.bf16.msra.mxu0 0
  %1033 = vmatprep.subr.bf16.mxu0 0
  %1034 = vmatpush1.bf16.msra.mxu0 0
  %1035 = vmatprep.subr.bf16.mxu0 0
  %1036 = vmatpush1.bf16.msra.mxu0 0
  %1037 = vmatprep.subr.bf16.mxu0 0
  %1038 = vmatpush1.bf16.msra.mxu0 0
  %1039 = vmatprep.subr.bf16.mxu0 0
  %1040 = vmatpush1.bf16.msra.mxu0 0
  %1041 = vmatprep.mubr.bf16.mxu0 0
  %1042 = vmatmul.mubr.bf16.gmra.mrb[0].mxu0 %v922
  %v1043 = vpop.f32.mrb[0].mxu0
  %v1044 = vadd.f32 %v959, %v1043
  %v1045 = vpop.f32.mrb[0].mxu0
  %v1046 = vpop.f32.mrb[0].mxu0
  %v1047 = vadd.f32 %v959, %v1046
  %v1048 = vpop.f32.mrb[0].mxu0
  %1049 = vmatprep.mubr.bf16.mxu0 0
  %1050 = vmatmul.mubr.bf16.gmra.mrb[0].mxu0 %v923
  %v1051 = vpop.f32.mrb[0].mxu0
  %v1052 = vadd.f32 %v959, %v1051
  %v1053 = vpop.f32.mrb[0].mxu0
  %v1054 = vpop.f32.mrb[0].mxu0
  %v1055 = vadd.f32 %v959, %v1054
  %v1056 = vpop.f32.mrb[0].mxu0
  %1057 = vmatprep.mubr.bf16.mxu0 0
  %1058 = vmatmul.mubr.bf16.gmra.mrb[0].mxu0 %v924
  %v1059 = vpop.f32.mrb[0].mxu0
  %v1060 = vadd.f32 %v959, %v1059
  %v1061 = vpop.f32.mrb[0].mxu0
  %v1062 = vpop.f32.mrb[0].mxu0
  %v1063 = vadd.f32 %v959, %v1062
  %v1064 = vpop.f32.mrb[0].mxu0
  %1065 = vmatprep.mubr.bf16.mxu0 0
  %1066 = vmatmul.mubr.bf16.gmra.mrb[0].mxu0 %v925
  %v1067 = vpop.f32.mrb[0].mxu0
  %v1068 = vadd.f32 %v959, %v1067
  %v1069 = vpop.f32.mrb[0].mxu0
  %v1070 = vpop.f32.mrb[0].mxu0
  %v1071 = vadd.f32 %v959, %v1070
  %v1072 = vpop.f32.mrb[0].mxu0
  %1073 = vmatprep.mubr.bf16.mxu0 0
  %1074 = vmatmul.mubr.bf16.gmra.mrb[0].mxu0 %v926
  %v1075 = vpop.f32.mrb[0].mxu0
  %v1076 = vadd.f32 %v959, %v1075
  %v1077 = vpop.f32.mrb[0].mxu0
  %v1078 = vpop.f32.mrb[0].mxu0
  %v1079 = vadd.f32 %v959, %v1078
  %v1080 = vpop.f32.mrb[0].mxu0
  %1081 = vmatprep.mubr.bf16.mxu0 0
  %1082 = vmatmul.mubr.bf16.gmra.mrb[0].mxu0 %v927
  %v1083 = vpop.f32.mrb[0].mxu0
  %v1084 = vadd.f32 %v959, %v1083
  %v1085 = vpop.f32.mrb[0].mxu0
  %v1086 = vpop.f32.mrb[0].mxu0
  %v1087 = vadd.f32 %v959, %v1086
  %v1088 = vpop.f32.mrb[0].mxu0
  %1089 = vmatprep.mubr.bf16.mxu0 0
  %1090 = vmatmul.mubr.bf16.gmra.mrb[0].mxu0 %v928
  %v1091 = vpop.f32.mrb[0].mxu0
  %v1092 = vadd.f32 %v959, %v1091
  %v1093 = vpop.f32.mrb[0].mxu0
  %v1094 = vpop.f32.mrb[0].mxu0
  %v1095 = vadd.f32 %v959, %v1094
  %v1096 = vpop.f32.mrb[0].mxu0
  %1097 = vmatprep.mubr.bf16.mxu0 0
  %1098 = vmatmul.mubr.bf16.gmra.mrb[0].mxu0 %v929
  %v1099 = vpop.f32.mrb[0].mxu0
  %v1100 = vadd.f32 %v959, %v1099
  %v1101 = vpop.f32.mrb[0].mxu0
  %v1102 = vpop.f32.mrb[0].mxu0
  %v1103 = vadd.f32 %v959, %v1102
  %v1104 = vpop.f32.mrb[0].mxu0
  %1105 = vmatprep.mubr.bf16.mxu0 0
  %1106 = vmatmul.mubr.bf16.gmra.mrb[0].mxu0 %v930
  %v1107 = vpop.f32.mrb[0].mxu0
  %v1108 = vadd.f32 %v959, %v1107
  %v1109 = vpop.f32.mrb[0].mxu0
  %v1110 = vpop.f32.mrb[0].mxu0
  %v1111 = vadd.f32 %v959, %v1110
  %v1112 = vpop.f32.mrb[0].mxu0
  %1113 = vmatprep.mubr.bf16.mxu0 0
  %1114 = vmatmul.mubr.bf16.gmra.mrb[0].mxu0 %v931
  %v1115 = vpop.f32.mrb[0].mxu0
  %v1116 = vadd.f32 %v959, %v1115
  %v1117 = vpop.f32.mrb[0].mxu0
  %v1118 = vpop.f32.mrb[0].mxu0
  %v1119 = vadd.f32 %v959, %v1118
  %v1120 = vpop.f32.mrb[0].mxu0
  %1121 = vmatprep.mubr.bf16.mxu0 0
  %1122 = vmatmul.mubr.bf16.gmra.mrb[0].mxu0 %v932
  %v1123 = vpop.f32.mrb[0].mxu0
  %v1124 = vadd.f32 %v959, %v1123
  %v1125 = vpop.f32.mrb[0].mxu0
  %v1126 = vpop.f32.mrb[0].mxu0
  %v1127 = vadd.f32 %v959, %v1126
  %v1128 = vpop.f32.mrb[0].mxu0
  %1129 = vmatprep.mubr.bf16.mxu0 0
  %1130 = vmatmul.mubr.bf16.gmra.mrb[0].mxu0 %v933
  %v1131 = vpop.f32.mrb[0].mxu0
  %v1132 = vadd.f32 %v959, %v1131
  %v1133 = vpop.f32.mrb[0].mxu0
  %v1134 = vpop.f32.mrb[0].mxu0
  %v1135 = vadd.f32 %v959, %v1134
  %v1136 = vpop.f32.mrb[0].mxu0
  %1137 = vmatprep.mubr.bf16.mxu0 0
  %1138 = vmatmul.mubr.bf16.gmra.mrb[0].mxu0 %v934
  %v1139 = vpop.f32.mrb[0].mxu0
  %v1140 = vadd.f32 %v959, %v1139
  %v1141 = vpop.f32.mrb[0].mxu0
  %v1142 = vpop.f32.mrb[0].mxu0
  %v1143 = vadd.f32 %v959, %v1142
  %v1144 = vpop.f32.mrb[0].mxu0
  %1145 = vmatprep.mubr.bf16.mxu0 0
  %1146 = vmatmul.mubr.bf16.gmra.mrb[0].mxu0 %v935
  %v1147 = vpop.f32.mrb[0].mxu0
  %v1148 = vadd.f32 %v959, %v1147
  %v1149 = vpop.f32.mrb[0].mxu0
  %v1150 = vpop.f32.mrb[0].mxu0
  %v1151 = vadd.f32 %v959, %v1150
  %v1152 = vpop.f32.mrb[0].mxu0
  %1153 = vmatprep.mubr.bf16.mxu0 0
  %1154 = vmatmul.mubr.bf16.gmra.mrb[0].mxu0 %v936
  %v1155 = vpop.f32.mrb[0].mxu0
  %v1156 = vadd.f32 %v959, %v1155
  %v1157 = vpop.f32.mrb[0].mxu0
  %v1158 = vpop.f32.mrb[0].mxu0
  %v1159 = vadd.f32 %v959, %v1158
  %v1160 = vpop.f32.mrb[0].mxu0
  %1161 = vmatprep.mubr.bf16.mxu0 0
  %1162 = vmatmul.mubr.bf16.gmra.mrb[0].mxu0 %v937
  %v1163 = vpop.f32.mrb[0].mxu0
  %v1164 = vadd.f32 %v959, %v1163
  %v1165 = vpop.f32.mrb[0].mxu0
  %v1166 = vpop.f32.mrb[0].mxu0
  %v1167 = vadd.f32 %v959, %v1166
  %v1168 = vpop.f32.mrb[0].mxu0
  %1169 = vdwg.mxu0
  %v1170 = vunpack.c.l.bf16 %v529
  %v1171 = vunpack.c.h.bf16 %v529
  %v1172 = vunpack.c.l.bf16 %v530
  %v1173 = vunpack.c.h.bf16 %v530
  %v1174 = vunpack.c.l.bf16 %v531
  %v1175 = vunpack.c.h.bf16 %v531
  %v1176 = vunpack.c.l.bf16 %v532
  %v1177 = vunpack.c.h.bf16 %v532
  %v1178 = vunpack.c.l.bf16 %v533
  %v1179 = vunpack.c.h.bf16 %v533
  %v1180 = vunpack.c.l.bf16 %v534
  %v1181 = vunpack.c.h.bf16 %v534
  %v1182 = vunpack.c.l.bf16 %v535
  %v1183 = vunpack.c.h.bf16 %v535
  %v1184 = vunpack.c.l.bf16 %v536
  %v1185 = vunpack.c.h.bf16 %v536
  %v1186 = vunpack.c.l.bf16 %v537
  %v1187 = vunpack.c.h.bf16 %v537
  %v1188 = vunpack.c.l.bf16 %v538
  %v1189 = vunpack.c.h.bf16 %v538
  %v1190 = vunpack.c.l.bf16 %v539
  %v1191 = vunpack.c.h.bf16 %v539
  %v1192 = vunpack.c.l.bf16 %v540
  %v1193 = vunpack.c.h.bf16 %v540
  %v1194 = vunpack.c.l.bf16 %v541
  %v1195 = vunpack.c.h.bf16 %v541
  %v1196 = vunpack.c.l.bf16 %v542
  %v1197 = vunpack.c.h.bf16 %v542
  %v1198 = vunpack.c.l.bf16 %v543
  %v1199 = vunpack.c.h.bf16 %v543
  %v1200 = vunpack.c.l.bf16 %v544
  %v1201 = vunpack.c.h.bf16 %v544
  %v1202 = vadd.f32 %v1170, %v1044
  %v1203 = vadd.f32 %v1171, %v1047
  %v1204 = vadd.f32 %v1172, %v1052
  %v1205 = vadd.f32 %v1173, %v1055
  %v1206 = vadd.f32 %v1174, %v1060
  %v1207 = vadd.f32 %v1175, %v1063
  %v1208 = vadd.f32 %v1176, %v1068
  %v1209 = vadd.f32 %v1177, %v1071
  %v1210 = vadd.f32 %v1178, %v1076
  %v1211 = vadd.f32 %v1179, %v1079
  %v1212 = vadd.f32 %v1180, %v1084
  %v1213 = vadd.f32 %v1181, %v1087
  %v1214 = vadd.f32 %v1182, %v1092
  %v1215 = vadd.f32 %v1183, %v1095
  %v1216 = vadd.f32 %v1184, %v1100
  %v1217 = vadd.f32 %v1185, %v1103
  %v1218 = vadd.f32 %v1186, %v1108
  %v1219 = vadd.f32 %v1187, %v1111
  %v1220 = vadd.f32 %v1188, %v1116
  %v1221 = vadd.f32 %v1189, %v1119
  %v1222 = vadd.f32 %v1190, %v1124
  %v1223 = vadd.f32 %v1191, %v1127
  %v1224 = vadd.f32 %v1192, %v1132
  %v1225 = vadd.f32 %v1193, %v1135
  %v1226 = vadd.f32 %v1194, %v1140
  %v1227 = vadd.f32 %v1195, %v1143
  %v1228 = vadd.f32 %v1196, %v1148
  %v1229 = vadd.f32 %v1197, %v1151
  %v1230 = vadd.f32 %v1198, %v1156
  %v1231 = vadd.f32 %v1199, %v1159
  %v1232 = vadd.f32 %v1200, %v1164
  %v1233 = vadd.f32 %v1201, %v1167
  %v1234 = vpack.c.bf16 %v1203, %v1202
  %v1235 = vpack.c.bf16 %v1205, %v1204
  %v1236 = vpack.c.bf16 %v1207, %v1206
  %v1237 = vpack.c.bf16 %v1209, %v1208
  %v1238 = vpack.c.bf16 %v1211, %v1210
  %v1239 = vpack.c.bf16 %v1213, %v1212
  %v1240 = vpack.c.bf16 %v1215, %v1214
  %v1241 = vpack.c.bf16 %v1217, %v1216
  %v1242 = vpack.c.bf16 %v1219, %v1218
  %v1243 = vpack.c.bf16 %v1221, %v1220
  %v1244 = vpack.c.bf16 %v1223, %v1222
  %v1245 = vpack.c.bf16 %v1225, %v1224
  %v1246 = vpack.c.bf16 %v1227, %v1226
  %v1247 = vpack.c.bf16 %v1229, %v1228
  %v1248 = vpack.c.bf16 %v1231, %v1230
  %v1249 = vpack.c.bf16 %v1233, %v1232
  %v1250 = vld [vmem:[%s7] sm:$0xf]
  %v1251 = vld [vmem:[%s7 + $0x4] sm:$0xf]
  %v1252 = vld [vmem:[%s7 + $0x8] sm:$0xf]
  %v1253 = vld [vmem:[%s7 + $0xc] sm:$0xf]
  %v1254 = vld [vmem:[%s7 + $0x10] sm:$0xf]
  %v1255 = vld [vmem:[%s7 + $0x14] sm:$0xf]
  %v1256 = vld [vmem:[%s7 + $0x18] sm:$0xf]
  %v1257 = vld [vmem:[%s7 + $0x1c] sm:$0xf]
  %v1258 = vld [vmem:[%s7 + $0x20] sm:$0xf]
  %v1259 = vld [vmem:[%s7 + $0x24] sm:$0xf]
  %v1260 = vld [vmem:[%s7 + $0x28] sm:$0xf]
  %v1261 = vld [vmem:[%s7 + $0x2c] sm:$0xf]
  %v1262 = vld [vmem:[%s7 + $0x30] sm:$0xf]
  %v1263 = vld [vmem:[%s7 + $0x34] sm:$0xf]
  %v1264 = vld [vmem:[%s7 + $0x38] sm:$0xf]
  %v1265 = vld [vmem:[%s7 + $0x3c] sm:$0xf]
  %v1282 = vunpack.c.l.b16 %v1250
  %v1283 = vunpack.c.l.b16 %v1251
  %v1284 = vunpack.c.l.b16 %v1252
  %v1285 = vunpack.c.l.b16 %v1253
  %v1286 = vunpack.c.l.b16 %v1254
  %v1287 = vunpack.c.l.b16 %v1255
  %v1288 = vunpack.c.l.b16 %v1256
  %v1289 = vunpack.c.l.b16 %v1257
  %v1290 = vunpack.c.l.b16 %v1258
  %v1291 = vunpack.c.l.b16 %v1259
  %v1292 = vunpack.c.l.b16 %v1260
  %v1293 = vunpack.c.l.b16 %v1261
  %v1294 = vunpack.c.l.b16 %v1262
  %v1295 = vunpack.c.l.b16 %v1263
  %v1296 = vunpack.c.l.b16 %v1264
  %v1297 = vunpack.c.l.b16 %v1265
  %v1298 = vpack.c.b16 %v1283, %v1282
  %v1299 = vpack.c.b16 %v1285, %v1284
  %v1300 = vpack.c.b16 %v1287, %v1286
  %v1301 = vpack.c.b16 %v1289, %v1288
  %v1302 = vpack.c.b16 %v1291, %v1290
  %v1303 = vpack.c.b16 %v1293, %v1292
  %v1304 = vpack.c.b16 %v1295, %v1294
  %v1305 = vpack.c.b16 %v1297, %v1296
  %1314 = vmatprep.subr.bf16.mxu0 0
  %1315 = vmatpush1.bf16.msra.mxu0 %v1298
  %1316 = vmatprep.subr.bf16.mxu0 0
  %1317 = vmatpush1.bf16.msra.mxu0 %v1299
  %1318 = vmatprep.subr.bf16.mxu0 0
  %1319 = vmatpush1.bf16.msra.mxu0 %v1300
  %1320 = vmatprep.subr.bf16.mxu0 0
  %1321 = vmatpush1.bf16.msra.mxu0 %v1301
  %1322 = vmatprep.subr.bf16.mxu0 0
  %1323 = vmatpush1.bf16.msra.mxu0 %v1302
  %1324 = vmatprep.subr.bf16.mxu0 0
  %1325 = vmatpush1.bf16.msra.mxu0 %v1303
  %1326 = vmatprep.subr.bf16.mxu0 0
  %1327 = vmatpush1.bf16.msra.mxu0 %v1304
  %1328 = vmatprep.subr.bf16.mxu0 0
  %1329 = vmatpush1.bf16.msra.mxu0 %v1305
  %1330 = vmatprep.subr.bf16.mxu0 0
  %1331 = vmatpush1.bf16.msra.mxu0 0
  %1332 = vmatprep.subr.bf16.mxu0 0
  %1333 = vmatpush1.bf16.msra.mxu0 0
  %1334 = vmatprep.subr.bf16.mxu0 0
  %1335 = vmatpush1.bf16.msra.mxu0 0
  %1336 = vmatprep.subr.bf16.mxu0 0
  %1337 = vmatpush1.bf16.msra.mxu0 0
  %1338 = vmatprep.subr.bf16.mxu0 0
  %1339 = vmatpush1.bf16.msra.mxu0 0
  %1340 = vmatprep.subr.bf16.mxu0 0
  %1341 = vmatpush1.bf16.msra.mxu0 0
  %1342 = vmatprep.subr.bf16.mxu0 0
  %1343 = vmatpush1.bf16.msra.mxu0 0
  %1344 = vmatprep.subr.bf16.mxu0 0
  %1345 = vmatpush1.bf16.msra.mxu0 0
  %1346 = vmatprep.mubr.bf16.mxu0 0
  %1347 = vmatmul.mubr.bf16.gmra.mrb[0].mxu0 %v1234
  %v1348 = vpop.f32.mrb[0].mxu0
  %v1349 = vadd.f32 0.0, %v1348
  %v1350 = vpop.f32.mrb[0].mxu0
  %v1351 = vpop.f32.mrb[0].mxu0
  %v1352 = vadd.f32 0.0, %v1351
  %v1353 = vpop.f32.mrb[0].mxu0
  %1354 = vmatprep.mubr.bf16.mxu0 0
  %1355 = vmatmul.mubr.bf16.gmra.mrb[0].mxu0 %v1235
  %v1356 = vpop.f32.mrb[0].mxu0
  %v1357 = vadd.f32 0.0, %v1356
  %v1358 = vpop.f32.mrb[0].mxu0
  %v1359 = vpop.f32.mrb[0].mxu0
  %v1360 = vadd.f32 0.0, %v1359
  %v1361 = vpop.f32.mrb[0].mxu0
  %1362 = vmatprep.mubr.bf16.mxu0 0
  %1363 = vmatmul.mubr.bf16.gmra.mrb[0].mxu0 %v1236
  %v1364 = vpop.f32.mrb[0].mxu0
  %v1365 = vadd.f32 0.0, %v1364
  %v1366 = vpop.f32.mrb[0].mxu0
  %v1367 = vpop.f32.mrb[0].mxu0
  %v1368 = vadd.f32 0.0, %v1367
  %v1369 = vpop.f32.mrb[0].mxu0
  %1370 = vmatprep.mubr.bf16.mxu0 0
  %1371 = vmatmul.mubr.bf16.gmra.mrb[0].mxu0 %v1237
  %v1372 = vpop.f32.mrb[0].mxu0
  %v1373 = vadd.f32 0.0, %v1372
  %v1374 = vpop.f32.mrb[0].mxu0
  %v1375 = vpop.f32.mrb[0].mxu0
  %v1376 = vadd.f32 0.0, %v1375
  %v1377 = vpop.f32.mrb[0].mxu0
  %1378 = vmatprep.mubr.bf16.mxu0 0
  %1379 = vmatmul.mubr.bf16.gmra.mrb[0].mxu0 %v1238
  %v1380 = vpop.f32.mrb[0].mxu0
  %v1381 = vadd.f32 0.0, %v1380
  %v1382 = vpop.f32.mrb[0].mxu0
  %v1383 = vpop.f32.mrb[0].mxu0
  %v1384 = vadd.f32 0.0, %v1383
  %v1385 = vpop.f32.mrb[0].mxu0
  %1386 = vmatprep.mubr.bf16.mxu0 0
  %1387 = vmatmul.mubr.bf16.gmra.mrb[0].mxu0 %v1239
  %v1388 = vpop.f32.mrb[0].mxu0
  %v1389 = vadd.f32 0.0, %v1388
  %v1390 = vpop.f32.mrb[0].mxu0
  %v1391 = vpop.f32.mrb[0].mxu0
  %v1392 = vadd.f32 0.0, %v1391
  %v1393 = vpop.f32.mrb[0].mxu0
  %1394 = vmatprep.mubr.bf16.mxu0 0
  %1395 = vmatmul.mubr.bf16.gmra.mrb[0].mxu0 %v1240
  %v1396 = vpop.f32.mrb[0].mxu0
  %v1397 = vadd.f32 0.0, %v1396
  %v1398 = vpop.f32.mrb[0].mxu0
  %v1399 = vpop.f32.mrb[0].mxu0
  %v1400 = vadd.f32 0.0, %v1399
  %v1401 = vpop.f32.mrb[0].mxu0
  %1402 = vmatprep.mubr.bf16.mxu0 0
  %1403 = vmatmul.mubr.bf16.gmra.mrb[0].mxu0 %v1241
  %v1404 = vpop.f32.mrb[0].mxu0
  %v1405 = vadd.f32 0.0, %v1404
  %v1406 = vpop.f32.mrb[0].mxu0
  %v1407 = vpop.f32.mrb[0].mxu0
  %v1408 = vadd.f32 0.0, %v1407
  %v1409 = vpop.f32.mrb[0].mxu0
  %1410 = vmatprep.mubr.bf16.mxu0 0
  %1411 = vmatmul.mubr.bf16.gmra.mrb[0].mxu0 %v1242
  %v1412 = vpop.f32.mrb[0].mxu0
  %v1413 = vadd.f32 0.0, %v1412
  %v1414 = vpop.f32.mrb[0].mxu0
  %v1415 = vpop.f32.mrb[0].mxu0
  %v1416 = vadd.f32 0.0, %v1415
  %v1417 = vpop.f32.mrb[0].mxu0
  %1418 = vmatprep.mubr.bf16.mxu0 0
  %1419 = vmatmul.mubr.bf16.gmra.mrb[0].mxu0 %v1243
  %v1420 = vpop.f32.mrb[0].mxu0
  %v1421 = vadd.f32 0.0, %v1420
  %v1422 = vpop.f32.mrb[0].mxu0
  %v1423 = vpop.f32.mrb[0].mxu0
  %v1424 = vadd.f32 0.0, %v1423
  %v1425 = vpop.f32.mrb[0].mxu0
  %1426 = vmatprep.mubr.bf16.mxu0 0
  %1427 = vmatmul.mubr.bf16.gmra.mrb[0].mxu0 %v1244
  %v1428 = vpop.f32.mrb[0].mxu0
  %v1429 = vadd.f32 0.0, %v1428
  %v1430 = vpop.f32.mrb[0].mxu0
  %v1431 = vpop.f32.mrb[0].mxu0
  %v1432 = vadd.f32 0.0, %v1431
  %v1433 = vpop.f32.mrb[0].mxu0
  %1434 = vmatprep.mubr.bf16.mxu0 0
  %1435 = vmatmul.mubr.bf16.gmra.mrb[0].mxu0 %v1245
  %v1436 = vpop.f32.mrb[0].mxu0
  %v1437 = vadd.f32 0.0, %v1436
  %v1438 = vpop.f32.mrb[0].mxu0
  %v1439 = vpop.f32.mrb[0].mxu0
  %v1440 = vadd.f32 0.0, %v1439
  %v1441 = vpop.f32.mrb[0].mxu0
  %1442 = vmatprep.mubr.bf16.mxu0 0
  %1443 = vmatmul.mubr.bf16.gmra.mrb[0].mxu0 %v1246
  %v1444 = vpop.f32.mrb[0].mxu0
  %v1445 = vadd.f32 0.0, %v1444
  %v1446 = vpop.f32.mrb[0].mxu0
  %v1447 = vpop.f32.mrb[0].mxu0
  %v1448 = vadd.f32 0.0, %v1447
  %v1449 = vpop.f32.mrb[0].mxu0
  %1450 = vmatprep.mubr.bf16.mxu0 0
  %1451 = vmatmul.mubr.bf16.gmra.mrb[0].mxu0 %v1247
  %v1452 = vpop.f32.mrb[0].mxu0
  %v1453 = vadd.f32 0.0, %v1452
  %v1454 = vpop.f32.mrb[0].mxu0
  %v1455 = vpop.f32.mrb[0].mxu0
  %v1456 = vadd.f32 0.0, %v1455
  %v1457 = vpop.f32.mrb[0].mxu0
  %1458 = vmatprep.mubr.bf16.mxu0 0
  %1459 = vmatmul.mubr.bf16.gmra.mrb[0].mxu0 %v1248
  %v1460 = vpop.f32.mrb[0].mxu0
  %v1461 = vadd.f32 0.0, %v1460
  %v1462 = vpop.f32.mrb[0].mxu0
  %v1463 = vpop.f32.mrb[0].mxu0
  %v1464 = vadd.f32 0.0, %v1463
  %v1465 = vpop.f32.mrb[0].mxu0
  %1466 = vmatprep.mubr.bf16.mxu0 0
  %1467 = vmatmul.mubr.bf16.gmra.mrb[0].mxu0 %v1249
  %v1468 = vpop.f32.mrb[0].mxu0
  %v1469 = vadd.f32 0.0, %v1468
  %v1470 = vpop.f32.mrb[0].mxu0
  %v1471 = vpop.f32.mrb[0].mxu0
  %v1472 = vadd.f32 0.0, %v1471
  %v1473 = vpop.f32.mrb[0].mxu0
  %1474 = vdwg.mxu0
  %v1475 = vpack.c.bf16 %v1352, %v1349
  %v1476 = vpack.c.bf16 %v1360, %v1357
  %v1477 = vpack.c.bf16 %v1368, %v1365
  %v1478 = vpack.c.bf16 %v1376, %v1373
  %v1479 = vpack.c.bf16 %v1384, %v1381
  %v1480 = vpack.c.bf16 %v1392, %v1389
  %v1481 = vpack.c.bf16 %v1400, %v1397
  %v1482 = vpack.c.bf16 %v1408, %v1405
  %v1483 = vpack.c.bf16 %v1416, %v1413
  %v1484 = vpack.c.bf16 %v1424, %v1421
  %v1485 = vpack.c.bf16 %v1432, %v1429
  %v1486 = vpack.c.bf16 %v1440, %v1437
  %v1487 = vpack.c.bf16 %v1448, %v1445
  %v1488 = vpack.c.bf16 %v1456, %v1453
  %v1489 = vpack.c.bf16 %v1464, %v1461
  %v1490 = vpack.c.bf16 %v1472, %v1469
  %v1491 = vld [vmem:[%s8] sm:$0x1]
  %v1493 = vpack.i.b16 %v1491, %v1491
  %v1495 = vlaneseq
  %v1496 = vshrl.u32 %v1495, 7
  %v1497 = vsub.s32 0, %v1496
  %v1498 = vrot.slane %v1493, %v1497
  %v1499 = vadd.bf16 %v1475, %v1498
  %v1500 = vadd.bf16 %v1476, %v1498
  %v1501 = vadd.bf16 %v1477, %v1498
  %v1502 = vadd.bf16 %v1478, %v1498
  %v1503 = vadd.bf16 %v1479, %v1498
  %v1504 = vadd.bf16 %v1480, %v1498
  %v1505 = vadd.bf16 %v1481, %v1498
  %v1506 = vadd.bf16 %v1482, %v1498
  %v1507 = vadd.bf16 %v1483, %v1498
  %v1508 = vadd.bf16 %v1484, %v1498
  %v1509 = vadd.bf16 %v1485, %v1498
  %v1510 = vadd.bf16 %v1486, %v1498
  %v1511 = vadd.bf16 %v1487, %v1498
  %v1512 = vadd.bf16 %v1488, %v1498
  %v1513 = vadd.bf16 %v1489, %v1498
  %v1514 = vadd.bf16 %v1490, %v1498
  %v1515 = vxor.u32 %v1499, 2147516416
  %v1516 = vxor.u32 %v1500, 2147516416
  %v1517 = vxor.u32 %v1501, 2147516416
  %v1518 = vxor.u32 %v1502, 2147516416
  %v1519 = vxor.u32 %v1503, 2147516416
  %v1520 = vxor.u32 %v1504, 2147516416
  %v1521 = vxor.u32 %v1505, 2147516416
  %v1522 = vxor.u32 %v1506, 2147516416
  %v1523 = vxor.u32 %v1507, 2147516416
  %v1524 = vxor.u32 %v1508, 2147516416
  %v1525 = vxor.u32 %v1509, 2147516416
  %v1526 = vxor.u32 %v1510, 2147516416
  %v1527 = vxor.u32 %v1511, 2147516416
  %v1528 = vxor.u32 %v1512, 2147516416
  %v1529 = vxor.u32 %v1513, 2147516416
  %v1530 = vxor.u32 %v1514, 2147516416
  %v1532 = vmul.bf16 %v1515, 1069105081
  %v1533 = vpow.bf16.pop %v1532
  %v1535 = vmul.bf16 %v1516, 1069105081
  %v1536 = vpow.bf16.pop %v1535
  %v1538 = vmul.bf16 %v1517, 1069105081
  %v1539 = vpow.bf16.pop %v1538
  %v1541 = vmul.bf16 %v1518, 1069105081
  %v1542 = vpow.bf16.pop %v1541
  %v1544 = vmul.bf16 %v1519, 1069105081
  %v1545 = vpow.bf16.pop %v1544
  %v1547 = vmul.bf16 %v1520, 1069105081
  %v1548 = vpow.bf16.pop %v1547
  %v1550 = vmul.bf16 %v1521, 1069105081
  %v1551 = vpow.bf16.pop %v1550
  %v1553 = vmul.bf16 %v1522, 1069105081
  %v1554 = vpow.bf16.pop %v1553
  %v1556 = vmul.bf16 %v1523, 1069105081
  %v1557 = vpow.bf16.pop %v1556
  %v1559 = vmul.bf16 %v1524, 1069105081
  %v1560 = vpow.bf16.pop %v1559
  %v1562 = vmul.bf16 %v1525, 1069105081
  %v1563 = vpow.bf16.pop %v1562
  %v1565 = vmul.bf16 %v1526, 1069105081
  %v1566 = vpow.bf16.pop %v1565
  %v1568 = vmul.bf16 %v1527, 1069105081
  %v1569 = vpow.bf16.pop %v1568
  %v1571 = vmul.bf16 %v1528, 1069105081
  %v1572 = vpow.bf16.pop %v1571
  %v1574 = vmul.bf16 %v1529, 1069105081
  %v1575 = vpow.bf16.pop %v1574
  %v1577 = vmul.bf16 %v1530, 1069105081
  %v1578 = vpow.bf16.pop %v1577
  %v1579 = vadd.bf16 %v1533, 1065369472
  %v1580 = vadd.bf16 %v1536, 1065369472
  %v1581 = vadd.bf16 %v1539, 1065369472
  %v1582 = vadd.bf16 %v1542, 1065369472
  %v1583 = vadd.bf16 %v1545, 1065369472
  %v1584 = vadd.bf16 %v1548, 1065369472
  %v1585 = vadd.bf16 %v1551, 1065369472
  %v1586 = vadd.bf16 %v1554, 1065369472
  %v1587 = vadd.bf16 %v1557, 1065369472
  %v1588 = vadd.bf16 %v1560, 1065369472
  %v1589 = vadd.bf16 %v1563, 1065369472
  %v1590 = vadd.bf16 %v1566, 1065369472
  %v1591 = vadd.bf16 %v1569, 1065369472
  %v1592 = vadd.bf16 %v1572, 1065369472
  %v1593 = vadd.bf16 %v1575, 1065369472
  %v1594 = vadd.bf16 %v1578, 1065369472
  %v1595 = vrcp.bf16.pop %v1579
  %v1596 = vmul.bf16 1065369472, %v1595
  %v1597 = vrcp.bf16.pop %v1580
  %v1598 = vmul.bf16 1065369472, %v1597
  %v1599 = vrcp.bf16.pop %v1581
  %v1600 = vmul.bf16 1065369472, %v1599
  %v1601 = vrcp.bf16.pop %v1582
  %v1602 = vmul.bf16 1065369472, %v1601
  %v1603 = vrcp.bf16.pop %v1583
  %v1604 = vmul.bf16 1065369472, %v1603
  %v1605 = vrcp.bf16.pop %v1584
  %v1606 = vmul.bf16 1065369472, %v1605
  %v1607 = vrcp.bf16.pop %v1585
  %v1608 = vmul.bf16 1065369472, %v1607
  %v1609 = vrcp.bf16.pop %v1586
  %v1610 = vmul.bf16 1065369472, %v1609
  %v1611 = vrcp.bf16.pop %v1587
  %v1612 = vmul.bf16 1065369472, %v1611
  %v1613 = vrcp.bf16.pop %v1588
  %v1614 = vmul.bf16 1065369472, %v1613
  %v1615 = vrcp.bf16.pop %v1589
  %v1616 = vmul.bf16 1065369472, %v1615
  %v1617 = vrcp.bf16.pop %v1590
  %v1618 = vmul.bf16 1065369472, %v1617
  %v1619 = vrcp.bf16.pop %v1591
  %v1620 = vmul.bf16 1065369472, %v1619
  %v1621 = vrcp.bf16.pop %v1592
  %v1622 = vmul.bf16 1065369472, %v1621
  %v1623 = vrcp.bf16.pop %v1593
  %v1624 = vmul.bf16 1065369472, %v1623
  %v1625 = vrcp.bf16.pop %v1594
  %v1626 = vmul.bf16 1065369472, %v1625
  %v1627 = vmul.bf16 %v1499, %v1596
  %v1628 = vmul.bf16 %v1500, %v1598
  %v1629 = vmul.bf16 %v1501, %v1600
  %v1630 = vmul.bf16 %v1502, %v1602
  %v1631 = vmul.bf16 %v1503, %v1604
  %v1632 = vmul.bf16 %v1504, %v1606
  %v1633 = vmul.bf16 %v1505, %v1608
  %v1634 = vmul.bf16 %v1506, %v1610
  %v1635 = vmul.bf16 %v1507, %v1612
  %v1636 = vmul.bf16 %v1508, %v1614
  %v1637 = vmul.bf16 %v1509, %v1616
  %v1638 = vmul.bf16 %v1510, %v1618
  %v1639 = vmul.bf16 %v1511, %v1620
  %v1640 = vmul.bf16 %v1512, %v1622
  %v1641 = vmul.bf16 %v1513, %v1624
  %v1642 = vmul.bf16 %v1514, %v1626
  %v1643 = vld [vmem:[%s9] sm:$0xf]
  %v1644 = vunpack.c.l.bf16 %v1627
  %v1645 = vunpack.c.h.bf16 %v1627
  %v1646 = vunpack.c.l.bf16 %v1628
  %v1647 = vunpack.c.h.bf16 %v1628
  %v1648 = vunpack.c.l.bf16 %v1629
  %v1649 = vunpack.c.h.bf16 %v1629
  %v1650 = vunpack.c.l.bf16 %v1630
  %v1651 = vunpack.c.h.bf16 %v1630
  %v1652 = vunpack.c.l.bf16 %v1631
  %v1653 = vunpack.c.h.bf16 %v1631
  %v1654 = vunpack.c.l.bf16 %v1632
  %v1655 = vunpack.c.h.bf16 %v1632
  %v1656 = vunpack.c.l.bf16 %v1633
  %v1657 = vunpack.c.h.bf16 %v1633
  %v1658 = vunpack.c.l.bf16 %v1634
  %v1659 = vunpack.c.h.bf16 %v1634
  %v1660 = vunpack.c.l.bf16 %v1635
  %v1661 = vunpack.c.h.bf16 %v1635
  %v1662 = vunpack.c.l.bf16 %v1636
  %v1663 = vunpack.c.h.bf16 %v1636
  %v1664 = vunpack.c.l.bf16 %v1637
  %v1665 = vunpack.c.h.bf16 %v1637
  %v1666 = vunpack.c.l.bf16 %v1638
  %v1667 = vunpack.c.h.bf16 %v1638
  %v1668 = vunpack.c.l.bf16 %v1639
  %v1669 = vunpack.c.h.bf16 %v1639
  %v1670 = vunpack.c.l.bf16 %v1640
  %v1671 = vunpack.c.h.bf16 %v1640
  %v1672 = vunpack.c.l.bf16 %v1641
  %v1673 = vunpack.c.h.bf16 %v1641
  %v1674 = vunpack.c.l.bf16 %v1642
  %v1675 = vunpack.c.h.bf16 %v1642
  %v1676 = vadd.f32 %v1644, %v1645
  %v1677 = vadd.f32 %v1676, %v1646
  %v1678 = vadd.f32 %v1677, %v1647
  %v1679 = vadd.f32 %v1678, %v1648
  %v1680 = vadd.f32 %v1679, %v1649
  %v1681 = vadd.f32 %v1680, %v1650
  %v1682 = vadd.f32 %v1681, %v1651
  %v1683 = vrot.slane %v1682, 4
  %v1684 = vadd.f32 %v1682, %v1683
  %v1685 = vrot.slane %v1684, 2
  %v1686 = vadd.f32 %v1684, %v1685
  %v1687 = vrot.slane %v1686, 1
  %v1688 = vadd.f32 %v1686, %v1687
  %v1689 = vadd.f32 %v1652, %v1653
  %v1690 = vadd.f32 %v1689, %v1654
  %v1691 = vadd.f32 %v1690, %v1655
  %v1692 = vadd.f32 %v1691, %v1656
  %v1693 = vadd.f32 %v1692, %v1657
  %v1694 = vadd.f32 %v1693, %v1658
  %v1695 = vadd.f32 %v1694, %v1659
  %v1696 = vrot.slane %v1695, 4
  %v1697 = vadd.f32 %v1695, %v1696
  %v1698 = vrot.slane %v1697, 2
  %v1699 = vadd.f32 %v1697, %v1698
  %v1700 = vrot.slane %v1699, 1
  %v1701 = vadd.f32 %v1699, %v1700
  %v1702 = vadd.f32 %v1660, %v1661
  %v1703 = vadd.f32 %v1702, %v1662
  %v1704 = vadd.f32 %v1703, %v1663
  %v1705 = vadd.f32 %v1704, %v1664
  %v1706 = vadd.f32 %v1705, %v1665
  %v1707 = vadd.f32 %v1706, %v1666
  %v1708 = vadd.f32 %v1707, %v1667
  %v1709 = vrot.slane %v1708, 4
  %v1710 = vadd.f32 %v1708, %v1709
  %v1711 = vrot.slane %v1710, 2
  %v1712 = vadd.f32 %v1710, %v1711
  %v1713 = vrot.slane %v1712, 1
  %v1714 = vadd.f32 %v1712, %v1713
  %v1715 = vadd.f32 %v1668, %v1669
  %v1716 = vadd.f32 %v1715, %v1670
  %v1717 = vadd.f32 %v1716, %v1671
  %v1718 = vadd.f32 %v1717, %v1672
  %v1719 = vadd.f32 %v1718, %v1673
  %v1720 = vadd.f32 %v1719, %v1674
  %v1721 = vadd.f32 %v1720, %v1675
  %v1722 = vrot.slane %v1721, 4
  %v1723 = vadd.f32 %v1721, %v1722
  %v1724 = vrot.slane %v1723, 2
  %v1725 = vadd.f32 %v1723, %v1724
  %v1726 = vrot.slane %v1725, 1
  %v1727 = vadd.f32 %v1725, %v1726
  %vm1732 = vcmask 1041409
  %v1733 = vsel %vm1732, %v1701, %v1688
  %vm1734 = vcmask 1042434
  %v1735 = vsel %vm1734, %v1714, %v1733
  %vm1736 = vcmask 1043459
  %v1737 = vsel %vm1736, %v1727, %v1735
  %v1739 = vadd.f32 %v1643, %v1737
  %1740 = vst [vmem:[%s9] sm:$0xf] %v1739
  // Predicated region
  $region42: #{_lambda_.1} parent=0 // pred_check
    %p1741 = pneg %p34
  $region43: #{_lambda_.1} parent=0 // pred_check_branch
    %1743 = sbr.rel (%p1741) target = $region45
  $region44: #{_lambda_.1} parent=0 // pred_region
    %v1744 = vld [vmem:[%s9] sm:$0xf]
    %v1745 = vmul.f32 %v1744, 0.015625
    %1746 = vst [vmem:[%s9] sm:$0xf] %v1745
  $region45: #{_lambda_.1} parent=0 // pred_fallthru
    _
  // Predicated region
  $region46: #{_lambda_.1} parent=0 // pred_check
    _
  $region47: #{_lambda_.1} parent=0 // pred_check_branch
    %1748 = sbr.rel (0) target = $region49
  $region48: #{_lambda_.1} parent=0 // pred_region
    _
  $region49: #{_lambda_.1} parent=0 // pred_fallthru
    _
  // Predicated region
  $region50: #{_lambda_.1} parent=0 // pred_check
    _
  $region51: #{_lambda_.1} parent=0 // pred_check_branch
    %1750 = sbr.rel (0) target = $region53
  $region52: #{_lambda_.1} parent=0 // pred_region
    _
  $region53: #{_lambda_.1} parent=0 // pred_fallthru
    _

</llo_original>
